<compile_context>
chip_gen: v7x
topology: tpu7x:2x2x1
jax: 0.10.0
libtpu: 0.0.40
codegen_flags: <defaults>
</compile_context>

<pallas_src>
import math

import jax
import jax.numpy as jnp
from jax.experimental import pallas as pl
from jax.experimental.pallas import tpu as pltpu


# --------------------------------------------------------------------------- #
# Pallas kernels (transposed, lane-dense (channels, HW) layout)
# --------------------------------------------------------------------------- #
def _embed_mlp_kernel(base_ref, w1_ref, b1_ref, w2_ref, b2_ref, pos_ref):
    """Fused sinusoidal-embedding (folded into w1) + Conv1x1(.,256) SiLU Conv1x1(256,4)."""
    h = jnp.dot(w1_ref[...], base_ref[0],
                preferred_element_type=jnp.float32) + b1_ref[...]      # (256, HW)
    h = h * jax.nn.sigmoid(h)                                          # SiLU
    pos_ref[0] = jnp.dot(w2_ref[...], h,
                         preferred_element_type=jnp.float32) + b2_ref[...]  # (4, HW)


def _step_kernel(x_ref, big_ref, pos_ref, mask_ref,
                 w0_ref, b0_ref, gamma_ref, beta_ref,
                 w1h_ref, w1p_ref, b1_ref, out_ref):
    """Fused (perceive+fc0 folded) matmul + GroupNorm(1) + leaky_relu + fc1 + update."""
    big = big_ref[0]                                                   # (240, HW) bf16
    # fc0 with the three dilated convs folded in: single wide matmul, K=240
    h = jnp.dot(w0_ref[...], big,
                preferred_element_type=jnp.float32) + b0_ref[...]      # (hidden, HW)

    # GroupNorm(num_groups=1): one-pass stats over the whole (hidden, HW) sample
    n = h.shape[0] * h.shape[1]
    s1 = jnp.sum(h)
    s2 = jnp.sum(h * h)
    mu = s1 / n
    var = s2 / n - mu * mu
    hn = (h - mu) * jax.lax.rsqrt(var + 1e-5) * gamma_ref[...] + beta_ref[...]

    # leaky_relu (the transposes in PyTorch are elementwise no-ops here)
    hn = jnp.where(hn > 0, hn, 0.01 * hn)

    # fc1 on concat(hn, pos_t_enc): concat folded into two weight slices
    upd = (jnp.dot(w1h_ref[...], hn, preferred_element_type=jnp.float32)
           + jnp.dot(w1p_ref[...], pos_ref[0], preferred_element_type=jnp.float32)
           + b1_ref[...])                                              # (C, HW)

    out_ref[0] = x_ref[0] + upd * mask_ref[0]                          # stochastic residual


# --------------------------------------------------------------------------- #
# Shared helpers
# --------------------------------------------------------------------------- #
def _sin_mult():
    """(4, 4) sinusoidal multiplier matrix of channel_embedding_4d (channels=4)."""
    Cc = 4
    half = Cc // 2
    f32 = jnp.float32
    freq = jnp.exp(-math.log(10000.0) * jnp.arange(half, dtype=f32) / half)
    ch = jnp.arange(Cc, dtype=f32)
    return jnp.concatenate([jnp.cos(ch[:, None] * freq[None, :]),
                            jnp.sin(ch[:, None] * freq[None, :])], axis=1)


def _fire_mask_hw(mask_key, B, H, W, fire_rate):
    # torch.rand([B, W, H, 1]) > fire_rate applied on the (B, W, H, C) view ->
    # mask for pixel (b, h, w) is rand[b, w, h].
    rnd = jax.random.uniform(mask_key, (B, W, H), dtype=jnp.float32)
    return (jnp.transpose(rnd, (0, 2, 1)) > fire_rate).astype(jnp.float32)   # (B, H, W)


# --------------------------------------------------------------------------- #
# Parameters (deterministic, synthetic init) and offline weight folding
# --------------------------------------------------------------------------- #
def init_params(key, channel_n, hidden_size):
    Cp = channel_n // 3
    Cin = Cp + 4
    ks = jax.random.split(key, 16)

    def w(k, shape, fan_in):
        return jax.random.normal(k, shape, jnp.float32) / math.sqrt(fan_in)

    return dict(
        # embedding MLP (1x1 convs)
        w_e1=w(ks[0], (16, 256), 16), b_e1=w(ks[1], (1, 256), 16),
        w_e2=w(ks[2], (256, 4), 256), b_e2=w(ks[3], (1, 4), 256),
        # circular dilated 3x3 convs, in (tap, cin) x cout matmul form
        w_c1=w(ks[4], (9 * Cin, Cp), 9 * Cin), b_c1=w(ks[5], (1, Cp), 9 * Cin),
        w_c3=w(ks[6], (9 * Cin, Cp), 9 * Cin), b_c3=w(ks[7], (1, Cp), 9 * Cin),
        w_c7=w(ks[8], (9 * Cin, Cp), 9 * Cin), b_c7=w(ks[9], (1, Cp), 9 * Cin),
        # fc0 / fc1 (1x1 convs)
        w_f0=w(ks[10], (2 * channel_n + 12, hidden_size), 2 * channel_n + 12),
        b_f0=w(ks[11], (1, hidden_size), 2 * channel_n + 12),
        gamma=jnp.ones((1, hidden_size), jnp.float32),   # GroupNorm affine default
        beta=jnp.zeros((1, hidden_size), jnp.float32),
        w_f1=w(ks[12], (hidden_size + 4, channel_n), hidden_size + 4),
        b_f1=w(ks[13], (1, channel_n), hidden_size + 4),
    )


def fold_params(params, channel_n, hidden_size):
    """One-time algebraic folds + transposes into the kernel-native layout."""
    Cp = channel_n // 3
    Cin = Cp + 4
    nI = 3 * Cin

    # fold the sinusoidal channel embedding into the first embedding-MLP layer
    mult = _sin_mult()                                       # (4, 4)
    w_e1r = params["w_e1"].reshape(4, 4, -1)                 # (base_ch, emb_j, 256)
    w1T = jnp.einsum("cj,cjm->mc", mult, w_e1r)              # (256, 4)

    # fold the three dilated convs (and their biases) into fc0
    wf0 = params["w_f0"]
    wf0_i = wf0[:nI]
    wf0_y1 = wf0[nI:nI + Cp]
    wf0_y2 = wf0[nI + Cp:nI + 2 * Cp]
    wf0_y3 = wf0[nI + 2 * Cp:]
    W0 = jnp.concatenate([wf0_i,
                          params["w_c1"] @ wf0_y1,
                          params["w_c3"] @ wf0_y2,
                          params["w_c7"] @ wf0_y3], axis=0)          # (30*Cin, hidden)
    b0 = (params["b_f0"] + params["b_c1"] @ wf0_y1
          + params["b_c3"] @ wf0_y2 + params["b_c7"] @ wf0_y3)       # (1, hidden)

    wf1 = params["w_f1"]
    return dict(
        w1T=w1T, b1T=params["b_e1"].T,                               # (256,4), (256,1)
        w2T=params["w_e2"].T, b2T=params["b_e2"].T,                  # (4,256), (4,1)
        w0T=W0.T.astype(jnp.bfloat16),                               # (hidden, 30*Cin) bf16
        b0T=b0.T,                                                    # (hidden, 1)
        gammaT=params["gamma"].T, betaT=params["beta"].T,            # (hidden, 1)
        w1hT=wf1[:hidden_size].T, w1pT=wf1[hidden_size:].T,          # (C,hidden), (C,4)
        b1fT=params["b_f1"].T,                                       # (C, 1)
    )


# --------------------------------------------------------------------------- #
# Wrapper glue (plain JAX): pos/time base maps, circular im2col (channels-first)
# --------------------------------------------------------------------------- #
def _build_base(B, H, W, alive_rate, step):
    f32 = jnp.float32
    HW = H * W
    pos_x = jnp.tile(jnp.linspace(1.0, 0.0, W, dtype=f32), H)        # lin_w[p % W]
    pos_y = jnp.repeat(jnp.linspace(1.0, 0.0, H, dtype=f32), W)      # lin_h[p // W]
    return jnp.stack([
        jnp.broadcast_to(pos_x, (B, HW)),
        jnp.broadcast_to(pos_y, (B, HW)),
        jnp.broadcast_to(alive_rate.astype(f32)[:, None], (B, HW)),
        jnp.broadcast_to(jnp.asarray(step, f32), (B, HW)),
    ], axis=1)                                                        # (B, 4, HW)


def _build_fc0_input(x_flat, posT, Cp, H, W):
    """[ident | im2col(dx1,d=1) | im2col(dx2,d=3) | im2col(dx3,d=7)] -> (B, 30*Cin, HW)."""
    B = x_flat.shape[0]
    HW = H * W
    Cin = Cp + 4
    x4 = x_flat.reshape(B, -1, H, W)
    pos4 = posT.reshape(B, 4, H, W)
    dxs = [jnp.concatenate([x4[:, 0:Cp], pos4], axis=1),
           jnp.concatenate([x4[:, Cp:2 * Cp], pos4], axis=1),
           jnp.concatenate([x4[:, 2 * Cp:], pos4], axis=1)]
    parts = [jnp.concatenate(dxs, axis=1).reshape(B, 3 * Cin, HW)]    # ident
    for dx_i, d in zip(dxs, (1, 3, 7)):
        taps = []
        for kh in range(3):
            for kw in range(3):
                dy, dxo = (kh - 1) * d, (kw - 1) * d
                taps.append(jnp.roll(dx_i, shift=(-dy, -dxo), axis=(2, 3)))
        parts.append(jnp.concatenate(taps, axis=1).reshape(B, 9 * Cin, HW))
    return jnp.concatenate(parts, axis=1)                             # (B, 30*Cin, HW)


# --------------------------------------------------------------------------- #
# Pallas-backed Level.step
# --------------------------------------------------------------------------- #
def level_step(x_nchw, alive_rate, fire_rate, step, folded, mask_key):
    B, C, H, W = x_nchw.shape
    Cp = C // 3
    HW = H * W
    f32 = jnp.float32

    def row_spec(c):
        return pl.BlockSpec((1, c, HW), lambda b: (b, 0, 0))

    def full_spec(a):
        zeros = (0,) * a.ndim
        return pl.BlockSpec(a.shape, lambda b, _z=zeros: _z)

    cparams = pltpu.CompilerParams(dimension_semantics=("parallel",))

    # NCHW is already the kernel-native channels-first layout: reshape only.
    x_flat = x_nchw.astype(f32).reshape(B, C, HW)
    base = _build_base(B, H, W, alive_rate, step)                     # (B, 4, HW)

    # ---- kernel 1: (folded) sinusoidal embedding + MLP -> pos_t_enc ---------
    posT = pl.pallas_call(
        _embed_mlp_kernel,
        out_shape=jax.ShapeDtypeStruct((B, 4, HW), f32),
        grid=(B,),
        in_specs=[row_spec(4),
                  full_spec(folded["w1T"]), full_spec(folded["b1T"]),
                  full_spec(folded["w2T"]), full_spec(folded["b2T"])],
        out_specs=row_spec(4),
        compiler_params=cparams,
    )(base, folded["w1T"], folded["b1T"], folded["w2T"], folded["b2T"])

    # ---- glue: fused fc0 input (bf16) + stochastic fire mask -----------------
    bigT = _build_fc0_input(x_flat, posT, Cp, H, W).astype(jnp.bfloat16)
    maskT = _fire_mask_hw(mask_key, B, H, W, fire_rate).reshape(B, 1, HW)
    nBig = bigT.shape[1]

    # ---- kernel 2: fused fc0 + GroupNorm + leaky + fc1 + residual update -----
    outT = pl.pallas_call(
        _step_kernel,
        out_shape=jax.ShapeDtypeStruct((B, C, HW), f32),
        grid=(B,),
        in_specs=[row_spec(C), row_spec(nBig), row_spec(4), row_spec(1),
                  full_spec(folded["w0T"]), full_spec(folded["b0T"]),
                  full_spec(folded["gammaT"]), full_spec(folded["betaT"]),
                  full_spec(folded["w1hT"]), full_spec(folded["w1pT"]),
                  full_spec(folded["b1fT"])],
        out_specs=row_spec(C),
        compiler_params=cparams,
    )(x_flat, bigT, posT, maskT,
      folded["w0T"], folded["b0T"], folded["gammaT"], folded["betaT"],
      folded["w1hT"], folded["w1pT"], folded["b1fT"])

    return outT.reshape(B, C, H, W)                                   # NCHW, reshape only


# --------------------------------------------------------------------------- #
# Pure-JAX reference (original unfolded math, f32) for verification
# --------------------------------------------------------------------------- #
def _make_pos_maps(B, H, W, alive_rate, step):
    f32 = jnp.float32
    pos_x = jnp.broadcast_to(jnp.linspace(1.0, 0.0, W, dtype=f32)[None, None, :], (B, H, W))
    pos_y = jnp.broadcast_to(jnp.linspace(1.0, 0.0, H, dtype=f32)[None, :, None], (B, H, W))
    alive = jnp.broadcast_to(alive_rate.astype(f32)[:, None, None], (B, H, W))
    stepm = jnp.full((B, H, W), float(step), dtype=f32)
    return jnp.stack([pos_x, pos_y, alive, stepm], axis=-1)           # (B, H, W, 4)


def _sin_channel_embedding(base):
    B, H, W, Cc = base.shape
    mult = _sin_mult()                                                # (4, 4)
    out = base[..., :, None] * mult[None, None, None, :, :]
    return out.reshape(B, H, W, Cc * mult.shape[1])


def _im2col_circular(x_nhwc, d):
    taps = []
    for kh in range(3):
        for kw in range(3):
            dy, dxo = (kh - 1) * d, (kw - 1) * d
            taps.append(jnp.roll(x_nhwc, shift=(-dy, -dxo), axis=(1, 2)))
    return jnp.concatenate(taps, axis=-1)


def _perception_inputs(x_nhwc, pos_nhwc, Cp):
    B, H, W, C = x_nhwc.shape
    HW = H * W
    Cin = Cp + 4
    dx1 = jnp.concatenate([x_nhwc[..., 0:Cp], pos_nhwc], axis=-1)
    dx2 = jnp.concatenate([x_nhwc[..., Cp:2 * Cp], pos_nhwc], axis=-1)
    dx3 = jnp.concatenate([x_nhwc[..., 2 * Cp:], pos_nhwc], axis=-1)
    ident = jnp.concatenate([dx1, dx2, dx3], axis=-1).reshape(B, HW, 3 * Cin)
    p1 = _im2col_circular(dx1, 1).reshape(B, HW, 9 * Cin)
    p3 = _im2col_circular(dx2, 3).reshape(B, HW, 9 * Cin)
    p7 = _im2col_circular(dx3, 7).reshape(B, HW, 9 * Cin)
    return ident, p1, p3, p7


def reference_step(x_nchw, alive_rate, fire_rate, step, params, mask_key):
    B, C, H, W = x_nchw.shape
    Cp = C // 3
    HW = H * W
    hi = jax.lax.Precision.HIGHEST

    x = jnp.transpose(x_nchw, (0, 2, 3, 1)).astype(jnp.float32)
    base = _make_pos_maps(B, H, W, alive_rate, step)
    emb16 = _sin_channel_embedding(base).reshape(B, HW, 16)

    hp = jnp.dot(emb16, params["w_e1"], precision=hi) + params["b_e1"]
    hp = hp * jax.nn.sigmoid(hp)
    pos = jnp.dot(hp, params["w_e2"], precision=hi) + params["b_e2"]
    pos_nhwc = pos.reshape(B, H, W, 4)

    ident, p1, p3, p7 = _perception_inputs(x, pos_nhwc, Cp)
    y1 = jnp.dot(p1, params["w_c1"], precision=hi) + params["b_c1"]
    y2 = jnp.dot(p3, params["w_c3"], precision=hi) + params["b_c3"]
    y3 = jnp.dot(p7, params["w_c7"], precision=hi) + params["b_c7"]
    y = jnp.concatenate([ident, y1, y2, y3], axis=-1)
    h = jnp.dot(y, params["w_f0"], precision=hi) + params["b_f0"]

    mu = jnp.mean(h, axis=(1, 2), keepdims=True)
    var = jnp.mean((h - mu) ** 2, axis=(1, 2), keepdims=True)
    hn = (h - mu) * jax.lax.rsqrt(var + 1e-5) * params["gamma"] + params["beta"]
    hn = jnp.where(hn > 0, hn, 0.01 * hn)

    o = jnp.dot(jnp.concatenate([hn, pos], axis=-1), params["w_f1"], precision=hi) + params["b_f1"]
    mask = _fire_mask_hw(mask_key, B, H, W, fire_rate).reshape(B, HW, 1)
    out = x.reshape(B, HW, C) + o * mask
    return jnp.transpose(out.reshape(B, H, W, C), (0, 3, 1, 2))


# --------------------------------------------------------------------------- #
if __name__ == "__main__":
    B, channel_n, hidden_size = 2, 12, 32        # channel_n divisible by 3
    H = W = 16                                   # H*W = 256: lane-dense blocks

    key = jax.random.PRNGKey(0)
    k_param, k_x, k_alive, k_mask = jax.random.split(key, 4)

    params = init_params(k_param, channel_n, hidden_size)
    folded = fold_params(params, channel_n, hidden_size)   # one-time weight prep
    x = jax.random.normal(k_x, (B, channel_n, H, W), jnp.float32)     # NCHW
    alive_rate = jax.random.uniform(k_alive, (B,), jnp.float32)
    fire_rate = 0.5
    step = 3.0

    step_fn = jax.jit(level_step)
    out = step_fn(x, alive_rate, fire_rate, step, folded, k_mask)
    out = jax.block_until_ready(out)

    ref = reference_step(x, alive_rate, fire_rate, step, params, k_mask)
    assert out.shape == x.shape and out.dtype == jnp.float32
    assert bool(jnp.all(jnp.isfinite(out)))
    max_err = float(jnp.max(jnp.abs(out - ref)))
    # fc0 path streams the 9x-duplicated im2col tensor + fused weight in bf16.
    assert max_err < 5e-2, f"mismatch vs reference: {max_err}"
    print("KERNEL_OK")
</pallas_src>

<mosaic_0001>
module attributes {stable_mosaic.version = 11 : i64} {
  func.func @_embed_mlp_kernel(%arg0: i32, %arg1: memref<1x4x256xf32, #tpu.memory_space<vmem>>, %arg2: memref<256x4xf32, #tpu.memory_space<vmem>>, %arg3: memref<256x1xf32, #tpu.memory_space<vmem>>, %arg4: memref<4x256xf32, #tpu.memory_space<vmem>>, %arg5: memref<4x1xf32, #tpu.memory_space<vmem>>, %arg6: memref<1x4x256xf32, #tpu.memory_space<vmem>>) attributes {dimension_semantics = [#tpu.dimension_semantics<parallel>], iteration_bounds = array<i64: 2>, scalar_prefetch = 0 : i64, scratch_operands = 0 : i64, tpu.core_type = #tpu.core_type<tc>, window_params = [{transform_indices = @transform_0, window_bounds = array<i64: 1, 4, 256>}, {pipeline_mode = #tpu.pipeline_mode<synchronous>, transform_indices = @transform_1, window_bounds = array<i64: 256, 4>}, {pipeline_mode = #tpu.pipeline_mode<synchronous>, transform_indices = @transform_2, window_bounds = array<i64: 256, 1>}, {pipeline_mode = #tpu.pipeline_mode<synchronous>, transform_indices = @transform_3, window_bounds = array<i64: 4, 256>}, {pipeline_mode = #tpu.pipeline_mode<synchronous>, transform_indices = @transform_4, window_bounds = array<i64: 4, 1>}, {transform_indices = @transform_5, window_bounds = array<i64: 1, 4, 256>}]} {
    %c0 = arith.constant 0 : index
    %c0_0 = arith.constant 0 : index
    %0 = vector.load %arg2[%c0, %c0_0] : memref<256x4xf32, #tpu.memory_space<vmem>>, vector<256x4xf32>
    %c0_1 = arith.constant 0 : index
    %c0_2 = arith.constant 0 : index
    %c0_3 = arith.constant 0 : index
    %1 = vector.load %arg1[%c0_1, %c0_2, %c0_3] : memref<1x4x256xf32, #tpu.memory_space<vmem>>, vector<1x4x256xf32>
    %2 = vector.shape_cast %1 : vector<1x4x256xf32> to vector<4x256xf32>
    %cst = arith.constant dense<0.000000e+00> : vector<256x256xf32>
    %3 = tpu.matmul %0, %2, %cst {dimension_numbers = #tpu.dot_dimension_numbers<[1], [0], [0], [1], [0, 0, 1, 1], [], []>} : vector<256x4xf32>, vector<4x256xf32>, vector<256x256xf32> -> vector<256x256xf32>
    %c0_4 = arith.constant 0 : index
    %c0_5 = arith.constant 0 : index
    %4 = vector.load %arg3[%c0_4, %c0_5] : memref<256x1xf32, #tpu.memory_space<vmem>>, vector<256x1xf32>
    %5 = vector.broadcast %4 : vector<256x1xf32> to vector<256x256xf32>
    %6 = arith.addf %3, %5 : vector<256x256xf32>
    %7 = arith.negf %6 : vector<256x256xf32>
    %8 = math.exp %7 : vector<256x256xf32>
    %cst_6 = arith.constant 1.000000e+00 : f32
    %9 = vector.broadcast %cst_6 : f32 to vector<256x256xf32>
    %10 = arith.addf %9, %8 : vector<256x256xf32>
    %11 = arith.divf %9, %10 : vector<256x256xf32>
    %12 = arith.mulf %6, %11 : vector<256x256xf32>
    %c0_7 = arith.constant 0 : index
    %c0_8 = arith.constant 0 : index
    %13 = vector.load %arg4[%c0_7, %c0_8] : memref<4x256xf32, #tpu.memory_space<vmem>>, vector<4x256xf32>
    %cst_9 = arith.constant dense<0.000000e+00> : vector<4x256xf32>
    %14 = tpu.matmul %13, %12, %cst_9 {dimension_numbers = #tpu.dot_dimension_numbers<[1], [0], [0], [1], [0, 0, 1, 1], [], []>} : vector<4x256xf32>, vector<256x256xf32>, vector<4x256xf32> -> vector<4x256xf32>
    %c0_10 = arith.constant 0 : index
    %c0_11 = arith.constant 0 : index
    %15 = vector.load %arg5[%c0_10, %c0_11] : memref<4x1xf32, #tpu.memory_space<vmem>>, vector<4x1xf32>
    %16 = vector.broadcast %15 : vector<4x1xf32> to vector<4x256xf32>
    %17 = arith.addf %14, %16 : vector<4x256xf32>
    %c0_12 = arith.constant 0 : index
    %c0_13 = arith.constant 0 : index
    %c0_14 = arith.constant 0 : index
    %18 = vector.load %arg6[%c0_12, %c0_13, %c0_14] : memref<1x4x256xf32, #tpu.memory_space<vmem>>, vector<1x4x256xf32>
    %19 = vector.shape_cast %18 : vector<1x4x256xf32> to vector<4x256xf32>
    %20 = vector.shape_cast %17 : vector<4x256xf32> to vector<1x4x256xf32>
    tpu.vector_store %arg6[%c0_12, %c0_13, %c0_14], %20 {strides = array<i32>} : memref<1x4x256xf32, #tpu.memory_space<vmem>>, vector<1x4x256xf32>,
    return
  }
  func.func @transform_0(%arg0: i32) -> (i32, i32, i32) {
    %c0_i32 = arith.constant 0 : i32
    %c0_i32_0 = arith.constant 0 : i32
    %c0_i32_1 = arith.constant 0 : i32
    return %arg0, %c0_i32, %c0_i32_0 : i32, i32, i32
  }
  func.func @transform_1(%arg0: i32) -> (i32, i32) {
    %c0_i32 = arith.constant 0 : i32
    %c0_i32_0 = arith.constant 0 : i32
    %c0_i32_1 = arith.constant 0 : i32
    return %c0_i32, %c0_i32_0 : i32, i32
  }
  func.func @transform_2(%arg0: i32) -> (i32, i32) {
    %c0_i32 = arith.constant 0 : i32
    %c0_i32_0 = arith.constant 0 : i32
    %c0_i32_1 = arith.constant 0 : i32
    return %c0_i32, %c0_i32_0 : i32, i32
  }
  func.func @transform_3(%arg0: i32) -> (i32, i32) {
    %c0_i32 = arith.constant 0 : i32
    %c0_i32_0 = arith.constant 0 : i32
    %c0_i32_1 = arith.constant 0 : i32
    return %c0_i32, %c0_i32_0 : i32, i32
  }
  func.func @transform_4(%arg0: i32) -> (i32, i32) {
    %c0_i32 = arith.constant 0 : i32
    %c0_i32_0 = arith.constant 0 : i32
    %c0_i32_1 = arith.constant 0 : i32
    return %c0_i32, %c0_i32_0 : i32, i32
  }
  func.func @transform_5(%arg0: i32) -> (i32, i32, i32) {
    %c0_i32 = arith.constant 0 : i32
    %c0_i32_0 = arith.constant 0 : i32
    %c0_i32_1 = arith.constant 0 : i32
    return %arg0, %c0_i32, %c0_i32_0 : i32, i32, i32
  }
}

module attributes {stable_mosaic.version = 11 : i64} {
  func.func @_step_kernel(%arg0: i32, %arg1: memref<1x12x256xf32, #tpu.memory_space<vmem>>, %arg2: memref<1x240x256xbf16, #tpu.memory_space<vmem>>, %arg3: memref<1x4x256xf32, #tpu.memory_space<vmem>>, %arg4: memref<1x1x256xf32, #tpu.memory_space<vmem>>, %arg5: memref<32x240xbf16, #tpu.memory_space<vmem>>, %arg6: memref<32x1xf32, #tpu.memory_space<vmem>>, %arg7: memref<32x1xf32, #tpu.memory_space<vmem>>, %arg8: memref<32x1xf32, #tpu.memory_space<vmem>>, %arg9: memref<12x32xf32, #tpu.memory_space<vmem>>, %arg10: memref<12x4xf32, #tpu.memory_space<vmem>>, %arg11: memref<12x1xf32, #tpu.memory_space<vmem>>, %arg12: memref<1x12x256xf32, #tpu.memory_space<vmem>>) attributes {dimension_semantics = [#tpu.dimension_semantics<parallel>], iteration_bounds = array<i64: 2>, scalar_prefetch = 0 : i64, scratch_operands = 0 : i64, tpu.core_type = #tpu.core_type<tc>, window_params = [{transform_indices = @transform_0, window_bounds = array<i64: 1, 12, 256>}, {transform_indices = @transform_1, window_bounds = array<i64: 1, 240, 256>}, {transform_indices = @transform_2, window_bounds = array<i64: 1, 4, 256>}, {transform_indices = @transform_3, window_bounds = array<i64: 1, 1, 256>}, {pipeline_mode = #tpu.pipeline_mode<synchronous>, transform_indices = @transform_4, window_bounds = array<i64: 32, 240>}, {pipeline_mode = #tpu.pipeline_mode<synchronous>, transform_indices = @transform_5, window_bounds = array<i64: 32, 1>}, {pipeline_mode = #tpu.pipeline_mode<synchronous>, transform_indices = @transform_6, window_bounds = array<i64: 32, 1>}, {pipeline_mode = #tpu.pipeline_mode<synchronous>, transform_indices = @transform_7, window_bounds = array<i64: 32, 1>}, {pipeline_mode = #tpu.pipeline_mode<synchronous>, transform_indices = @transform_8, window_bounds = array<i64: 12, 32>}, {pipeline_mode = #tpu.pipeline_mode<synchronous>, transform_indices = @transform_9, window_bounds = array<i64: 12, 4>}, {pipeline_mode = #tpu.pipeline_mode<synchronous>, transform_indices = @transform_10, window_bounds = array<i64: 12, 1>}, {transform_indices = @transform_11, window_bounds = array<i64: 1, 12, 256>}]} {
    %c0 = arith.constant 0 : index
    %c0_0 = arith.constant 0 : index
    %c0_1 = arith.constant 0 : index
    %0 = vector.load %arg2[%c0, %c0_0, %c0_1] : memref<1x240x256xbf16, #tpu.memory_space<vmem>>, vector<1x240x256xbf16>
    %1 = vector.shape_cast %0 : vector<1x240x256xbf16> to vector<240x256xbf16>
    %c0_2 = arith.constant 0 : index
    %c0_3 = arith.constant 0 : index
    %2 = vector.load %arg5[%c0_2, %c0_3] : memref<32x240xbf16, #tpu.memory_space<vmem>>, vector<32x240xbf16>
    %cst = arith.constant dense<0.000000e+00> : vector<32x256xf32>
    %3 = tpu.matmul %2, %1, %cst {dimension_numbers = #tpu.dot_dimension_numbers<[1], [0], [0], [1], [0, 0, 1, 1], [], []>} : vector<32x240xbf16>, vector<240x256xbf16>, vector<32x256xf32> -> vector<32x256xf32>
    %c0_4 = arith.constant 0 : index
    %c0_5 = arith.constant 0 : index
    %4 = vector.load %arg6[%c0_4, %c0_5] : memref<32x1xf32, #tpu.memory_space<vmem>>, vector<32x1xf32>
    %5 = vector.broadcast %4 : vector<32x1xf32> to vector<32x256xf32>
    %6 = arith.addf %3, %5 : vector<32x256xf32>
    %7 = vector.shape_cast %6 : vector<32x256xf32> to vector<1x32x256xf32>
    %cst_6 = arith.constant dense<0.000000e+00> : vector<1xf32>
    %8 = vector.multi_reduction <add>, %7, %cst_6 [1, 2] : vector<1x32x256xf32> to vector<1xf32>
    %9 = vector.shape_cast %8 : vector<1xf32> to vector<1x1x1xf32>
    %10 = vector.extract %9[0, 0, 0] : f32 from vector<1x1x1xf32>
    %11 = arith.mulf %6, %6 : vector<32x256xf32>
    %12 = vector.shape_cast %11 : vector<32x256xf32> to vector<1x32x256xf32>
    %cst_7 = arith.constant dense<0.000000e+00> : vector<1xf32>
    %13 = vector.multi_reduction <add>, %12, %cst_7 [1, 2] : vector<1x32x256xf32> to vector<1xf32>
    %14 = vector.shape_cast %13 : vector<1xf32> to vector<1x1x1xf32>
    %15 = vector.extract %14[0, 0, 0] : f32 from vector<1x1x1xf32>
    %cst_8 = arith.constant 8.192000e+03 : f32
    %16 = arith.divf %10, %cst_8 : f32
    %cst_9 = arith.constant 8.192000e+03 : f32
    %17 = arith.divf %15, %cst_9 : f32
    %18 = arith.mulf %16, %16 : f32
    %19 = arith.subf %17, %18 : f32
    %20 = vector.broadcast %16 : f32 to vector<32x256xf32>
    %21 = arith.subf %6, %20 : vector<32x256xf32>
    %cst_10 = arith.constant 9.99999974E-6 : f32
    %22 = arith.addf %19, %cst_10 : f32
    %23 = math.rsqrt %22 : f32
    %24 = vector.broadcast %23 : f32 to vector<32x256xf32>
    %25 = arith.mulf %21, %24 : vector<32x256xf32>
    %c0_11 = arith.constant 0 : index
    %c0_12 = arith.constant 0 : index
    %26 = vector.load %arg7[%c0_11, %c0_12] : memref<32x1xf32, #tpu.memory_space<vmem>>, vector<32x1xf32>
    %27 = vector.broadcast %26 : vector<32x1xf32> to vector<32x256xf32>
    %28 = arith.mulf %25, %27 : vector<32x256xf32>
    %c0_13 = arith.constant 0 : index
    %c0_14 = arith.constant 0 : index
    %29 = vector.load %arg8[%c0_13, %c0_14] : memref<32x1xf32, #tpu.memory_space<vmem>>, vector<32x1xf32>
    %30 = vector.broadcast %29 : vector<32x1xf32> to vector<32x256xf32>
    %31 = arith.addf %28, %30 : vector<32x256xf32>
    %cst_15 = arith.constant 0.000000e+00 : f32
    %32 = vector.broadcast %cst_15 : f32 to vector<32x256xf32>
    %33 = arith.cmpf ogt, %31, %32 : vector<32x256xf32>
    %cst_16 = arith.constant 0.00999999977 : f32
    %34 = vector.broadcast %cst_16 : f32 to vector<32x256xf32>
    %35 = arith.mulf %34, %31 : vector<32x256xf32>
    %36 = arith.select %33, %31, %35 : vector<32x256xi1>, vector<32x256xf32>
    %c0_17 = arith.constant 0 : index
    %c0_18 = arith.constant 0 : index
    %37 = vector.load %arg9[%c0_17, %c0_18] : memref<12x32xf32, #tpu.memory_space<vmem>>, vector<12x32xf32>
    %cst_19 = arith.constant dense<0.000000e+00> : vector<12x256xf32>
    %38 = tpu.matmul %37, %36, %cst_19 {dimension_numbers = #tpu.dot_dimension_numbers<[1], [0], [0], [1], [0, 0, 1, 1], [], []>} : vector<12x32xf32>, vector<32x256xf32>, vector<12x256xf32> -> vector<12x256xf32>
    %c0_20 = arith.constant 0 : index
    %c0_21 = arith.constant 0 : index
    %39 = vector.load %arg10[%c0_20, %c0_21] : memref<12x4xf32, #tpu.memory_space<vmem>>, vector<12x4xf32>
    %c0_22 = arith.constant 0 : index
    %c0_23 = arith.constant 0 : index
    %c0_24 = arith.constant 0 : index
    %40 = vector.load %arg3[%c0_22, %c0_23, %c0_24] : memref<1x4x256xf32, #tpu.memory_space<vmem>>, vector<1x4x256xf32>
    %41 = vector.shape_cast %40 : vector<1x4x256xf32> to vector<4x256xf32>
    %cst_25 = arith.constant dense<0.000000e+00> : vector<12x256xf32>
    %42 = tpu.matmul %39, %41, %cst_25 {dimension_numbers = #tpu.dot_dimension_numbers<[1], [0], [0], [1], [0, 0, 1, 1], [], []>} : vector<12x4xf32>, vector<4x256xf32>, vector<12x256xf32> -> vector<12x256xf32>
    %43 = arith.addf %38, %42 : vector<12x256xf32>
    %c0_26 = arith.constant 0 : index
    %c0_27 = arith.constant 0 : index
    %44 = vector.load %arg11[%c0_26, %c0_27] : memref<12x1xf32, #tpu.memory_space<vmem>>, vector<12x1xf32>
    %45 = vector.broadcast %44 : vector<12x1xf32> to vector<12x256xf32>
    %46 = arith.addf %43, %45 : vector<12x256xf32>
    %c0_28 = arith.constant 0 : index
    %c0_29 = arith.constant 0 : index
    %c0_30 = arith.constant 0 : index
    %47 = vector.load %arg1[%c0_28, %c0_29, %c0_30] : memref<1x12x256xf32, #tpu.memory_space<vmem>>, vector<1x12x256xf32>
    %48 = vector.shape_cast %47 : vector<1x12x256xf32> to vector<12x256xf32>
    %c0_31 = arith.constant 0 : index
    %c0_32 = arith.constant 0 : index
    %c0_33 = arith.constant 0 : index
    %49 = vector.load %arg4[%c0_31, %c0_32, %c0_33] : memref<1x1x256xf32, #tpu.memory_space<vmem>>, vector<1x1x256xf32>
    %50 = vector.shape_cast %49 : vector<1x1x256xf32> to vector<1x256xf32>
    %51 = vector.broadcast %50 : vector<1x256xf32> to vector<12x256xf32>
    %52 = arith.mulf %46, %51 : vector<12x256xf32>
    %53 = arith.addf %48, %52 : vector<12x256xf32>
    %c0_34 = arith.constant 0 : index
    %c0_35 = arith.constant 0 : index
    %c0_36 = arith.constant 0 : index
    %54 = vector.load %arg12[%c0_34, %c0_35, %c0_36] : memref<1x12x256xf32, #tpu.memory_space<vmem>>, vector<1x12x256xf32>
    %55 = vector.shape_cast %54 : vector<1x12x256xf32> to vector<12x256xf32>
    %56 = vector.shape_cast %53 : vector<12x256xf32> to vector<1x12x256xf32>
    tpu.vector_store %arg12[%c0_34, %c0_35, %c0_36], %56 {strides = array<i32>} : memref<1x12x256xf32, #tpu.memory_space<vmem>>, vector<1x12x256xf32>,
    return
  }
  func.func @transform_0(%arg0: i32) -> (i32, i32, i32) {
    %c0_i32 = arith.constant 0 : i32
    %c0_i32_0 = arith.constant 0 : i32
    %c0_i32_1 = arith.constant 0 : i32
    return %arg0, %c0_i32, %c0_i32_0 : i32, i32, i32
  }
  func.func @transform_1(%arg0: i32) -> (i32, i32, i32) {
    %c0_i32 = arith.constant 0 : i32
    %c0_i32_0 = arith.constant 0 : i32
    %c0_i32_1 = arith.constant 0 : i32
    return %arg0, %c0_i32, %c0_i32_0 : i32, i32, i32
  }
  func.func @transform_2(%arg0: i32) -> (i32, i32, i32) {
    %c0_i32 = arith.constant 0 : i32
    %c0_i32_0 = arith.constant 0 : i32
    %c0_i32_1 = arith.constant 0 : i32
    return %arg0, %c0_i32, %c0_i32_0 : i32, i32, i32
  }
  func.func @transform_3(%arg0: i32) -> (i32, i32, i32) {
    %c0_i32 = arith.constant 0 : i32
    %c0_i32_0 = arith.constant 0 : i32
    %c0_i32_1 = arith.constant 0 : i32
    return %arg0, %c0_i32, %c0_i32_0 : i32, i32, i32
  }
  func.func @transform_4(%arg0: i32) -> (i32, i32) {
    %c0_i32 = arith.constant 0 : i32
    %c0_i32_0 = arith.constant 0 : i32
    %c0_i32_1 = arith.constant 0 : i32
    return %c0_i32, %c0_i32_0 : i32, i32
  }
  func.func @transform_5(%arg0: i32) -> (i32, i32) {
    %c0_i32 = arith.constant 0 : i32
    %c0_i32_0 = arith.constant 0 : i32
    %c0_i32_1 = arith.constant 0 : i32
    return %c0_i32, %c0_i32_0 : i32, i32
  }
  func.func @transform_6(%arg0: i32) -> (i32, i32) {
    %c0_i32 = arith.constant 0 : i32
    %c0_i32_0 = arith.constant 0 : i32
    %c0_i32_1 = arith.constant 0 : i32
    return %c0_i32, %c0_i32_0 : i32, i32
  }
  func.func @transform_7(%arg0: i32) -> (i32, i32) {
    %c0_i32 = arith.constant 0 : i32
    %c0_i32_0 = arith.constant 0 : i32
    %c0_i32_1 = arith.constant 0 : i32
    return %c0_i32, %c0_i32_0 : i32, i32
  }
  func.func @transform_8(%arg0: i32) -> (i32, i32) {
    %c0_i32 = arith.constant 0 : i32
    %c0_i32_0 = arith.constant 0 : i32
    %c0_i32_1 = arith.constant 0 : i32
    return %c0_i32, %c0_i32_0 : i32, i32
  }
  func.func @transform_9(%arg0: i32) -> (i32, i32) {
    %c0_i32 = arith.constant 0 : i32
    %c0_i32_0 = arith.constant 0 : i32
    %c0_i32_1 = arith.constant 0 : i32
    return %c0_i32, %c0_i32_0 : i32, i32
  }
  func.func @transform_10(%arg0: i32) -> (i32, i32) {
    %c0_i32 = arith.constant 0 : i32
    %c0_i32_0 = arith.constant 0 : i32
    %c0_i32_1 = arith.constant 0 : i32
    return %c0_i32, %c0_i32_0 : i32, i32
  }
  func.func @transform_11(%arg0: i32) -> (i32, i32, i32) {
    %c0_i32 = arith.constant 0 : i32
    %c0_i32_0 = arith.constant 0 : i32
    %c0_i32_1 = arith.constant 0 : i32
    return %arg0, %c0_i32, %c0_i32_0 : i32, i32, i32
  }
}

</mosaic_0001>

<llo_original>
// kernel: tile.8
$region0: #{tile.8}
  #allocation0 [shape = 's32[1]{0}', space=sflag, size = 0x4, scoped, tag = 'scoped memory for tile.8']
  %s0 = inlined_call_operand.vmem [shape: f32[16], index: 0, kind: input, shape index: {}]
  %s1 = inlined_call_operand.vmem [shape: f32[16,16], index: 1, kind: output, shape index: {}]
  // Predicated region
  $region2: #{tile.8} parent=0 // pred_check
    _
  $region3: #{tile.8} parent=0 // pred_check_branch
    %3 = sbr.rel (0) target = $region5
  $region4: #{tile.8} parent=0 // pred_region
    _
  $region5: #{tile.8} parent=0 // pred_fallthru
    _
  %v4 = vld [vmem:[%s0] ss:$0 sm:$0xff]
  %5 = vst [vmem:[%s1] sm:$0xff] %v4
  %s6 = scalar_lea.vmem %s1, 8
  %7 = vst [vmem:[%s6] sm:$0xff] %v4

// kernel: level_step.2
$region0: #{level_step.2}
  #allocation0 [shape = 'u32[]', space=smem, size = 0x4, offset = 0x4, fixed_abs, tag = 'smem constant byte address 0x4 - core index']
  #allocation1 [shape = 'u32[144,128]{1,0:T(1,128)}', space=vmem, size = 0x12000, scoped, tag = 'internal scratch']
  %s0 = inlined_call_operand.vmem [shape: f32[2,4,256], index: 0, kind: input, shape index: {}]
  %s1 = inlined_call_operand.vmem [shape: f32[256,4], index: 1, kind: input, shape index: {}]
  %s2 = inlined_call_operand.vmem [shape: f32[256,1], index: 2, kind: input, shape index: {}]
  %s3 = inlined_call_operand.vmem [shape: f32[4,256], index: 3, kind: input, shape index: {}]
  %s4 = inlined_call_operand.vmem [shape: f32[4,1], index: 4, kind: input, shape index: {}]
  %s5 = inlined_call_operand.vmem [shape: f32[2,4,256], index: 5, kind: output, shape index: {}]
  %s6 = sld [smem:[#allocation0]]
  $region53: #{level_step.2} parent=0
    _
  %s8 = ssub.s32 1, %s6
  %s9 = scalar_select 0, %s8, %s6
  loop: start=0, step=1, limit=4
  $region2: #{level_step.2} parent=0 // loop_pre_header
    _
  $region3: #{level_step.2} parent=0 // loop_header
    %s11 = sphi 0, %s15
    %p12 = scmp.ge.s32.totalorder %s11, 4
    %s21 = sphi 0, %s23
    %s24 = sphi 0, %s21
    %s25 = sphi 0, %s24
    %s41 = sphi 0, %s25
    %s45 = sphi 0, %s45
    %s47 = sphi 0, %s45
    %s48 = sphi 0, %s47
    %s62 = sphi 0, %s48
    %s66 = sphi 0, %s66
    %s68 = sphi 0, %s66
    %s69 = sphi 0, %s68
    %s83 = sphi 0, %s69
    %s87 = sphi 0, %s87
    %s89 = sphi 0, %s87
    %s90 = sphi 0, %s89
    %s104 = sphi 0, %s90
    %s108 = sphi 0, %s108
    %s110 = sphi 0, %s108
    %s111 = sphi 0, %s110
    %s125 = sphi 0, %s111
    %s131 = sphi 0, %s133
    %s134 = sphi 0, %s131
    %s135 = sphi 0, %s134
    %s151 = sphi 0, %s135
  $region4: #{level_step.2} parent=0 // loop_header_branch
    %14 = sbr.rel (%p12) target = $region8
  $region5: #{level_step.2} parent=0 // loop_body
    %s16 = ssub.s32 %s11, 1
    %s17 = ssub.s32 %s11, 2
    %s18 = sadd.s32 %s11, 1
    %s19 = ssub.s32 %s11, %s18
    %p20 = scmp.eq.s32.totalorder %s19, 0
    %s22 = sadd.s32 %s21, 1
    %s23 = scalar_select %p20, %s21, %s22
    %p26 = pneg %p20
    %p27 = scmp.eq.s32.totalorder %s11, 1
    %p28 = por %p26, %p27
    %p29 = scmp.ne.s32.totalorder %s21, %s24
    %p30 = scmp.eq.s32.totalorder %s11, 0
    %p31 = por %p29, %p30
    %p32 = scmp.ne.s32.totalorder %s21, %s24
    %p33 = scmp.eq.s32.totalorder %s16, 1
    %p34 = por %p32, %p33
    %p35 = scmp.ne.s32.totalorder %s24, %s25
    %p36 = scmp.eq.s32.totalorder %s16, 0
    %p37 = por %p35, %p36
    %p38 = scmp.ne.s32.totalorder %s24, %s25
    %p39 = scmp.eq.s32.totalorder %s17, 1
    %p40 = por %p38, %p39
    %p42 = scmp.ne.s32.totalorder %s25, %s41
    %p43 = scmp.eq.s32.totalorder %s17, 0
    %p44 = por %p42, %p43
    %s46 = sadd.s32 %s45, 1
    %p49 = scmp.eq.s32.totalorder %s11, 1
    %p50 = scmp.ne.s32.totalorder %s45, %s47
    %p51 = scmp.eq.s32.totalorder %s11, 0
    %p52 = por %p50, %p51
    %p53 = scmp.ne.s32.totalorder %s45, %s47
    %p54 = scmp.eq.s32.totalorder %s16, 1
    %p55 = por %p53, %p54
    %p56 = scmp.ne.s32.totalorder %s47, %s48
    %p57 = scmp.eq.s32.totalorder %s16, 0
    %p58 = por %p56, %p57
    %p59 = scmp.ne.s32.totalorder %s47, %s48
    %p60 = scmp.eq.s32.totalorder %s17, 1
    %p61 = por %p59, %p60
    %p63 = scmp.ne.s32.totalorder %s48, %s62
    %p64 = scmp.eq.s32.totalorder %s17, 0
    %p65 = por %p63, %p64
    %s67 = sadd.s32 %s66, 1
    %p70 = scmp.eq.s32.totalorder %s11, 1
    %p71 = scmp.ne.s32.totalorder %s66, %s68
    %p72 = scmp.eq.s32.totalorder %s11, 0
    %p73 = por %p71, %p72
    %p74 = scmp.ne.s32.totalorder %s66, %s68
    %p75 = scmp.eq.s32.totalorder %s16, 1
    %p76 = por %p74, %p75
    %p77 = scmp.ne.s32.totalorder %s68, %s69
    %p78 = scmp.eq.s32.totalorder %s16, 0
    %p79 = por %p77, %p78
    %p80 = scmp.ne.s32.totalorder %s68, %s69
    %p81 = scmp.eq.s32.totalorder %s17, 1
    %p82 = por %p80, %p81
    %p84 = scmp.ne.s32.totalorder %s69, %s83
    %p85 = scmp.eq.s32.totalorder %s17, 0
    %p86 = por %p84, %p85
    %s88 = sadd.s32 %s87, 1
    %p91 = scmp.eq.s32.totalorder %s11, 1
    %p92 = scmp.ne.s32.totalorder %s87, %s89
    %p93 = scmp.eq.s32.totalorder %s11, 0
    %p94 = por %p92, %p93
    %p95 = scmp.ne.s32.totalorder %s87, %s89
    %p96 = scmp.eq.s32.totalorder %s16, 1
    %p97 = por %p95, %p96
    %p98 = scmp.ne.s32.totalorder %s89, %s90
    %p99 = scmp.eq.s32.totalorder %s16, 0
    %p100 = por %p98, %p99
    %p101 = scmp.ne.s32.totalorder %s89, %s90
    %p102 = scmp.eq.s32.totalorder %s17, 1
    %p103 = por %p101, %p102
    %p105 = scmp.ne.s32.totalorder %s90, %s104
    %p106 = scmp.eq.s32.totalorder %s17, 0
    %p107 = por %p105, %p106
    %s109 = sadd.s32 %s108, 1
    %p112 = scmp.eq.s32.totalorder %s11, 1
    %p113 = scmp.ne.s32.totalorder %s108, %s110
    %p114 = scmp.eq.s32.totalorder %s11, 0
    %p115 = por %p113, %p114
    %p116 = scmp.ne.s32.totalorder %s108, %s110
    %p117 = scmp.eq.s32.totalorder %s16, 1
    %p118 = por %p116, %p117
    %p119 = scmp.ne.s32.totalorder %s110, %s111
    %p120 = scmp.eq.s32.totalorder %s16, 0
    %p121 = por %p119, %p120
    %p122 = scmp.ne.s32.totalorder %s110, %s111
    %p123 = scmp.eq.s32.totalorder %s17, 1
    %p124 = por %p122, %p123
    %p126 = scmp.ne.s32.totalorder %s111, %s125
    %p127 = scmp.eq.s32.totalorder %s17, 0
    %p128 = por %p126, %p127
    %s129 = ssub.s32 %s11, %s18
    %p130 = scmp.eq.s32.totalorder %s129, 0
    %s132 = sadd.s32 %s131, 1
    %s133 = scalar_select %p130, %s131, %s132
    %p136 = pneg %p130
    %p137 = scmp.eq.s32.totalorder %s11, 1
    %p138 = por %p136, %p137
    %p139 = scmp.ne.s32.totalorder %s131, %s134
    %p140 = scmp.eq.s32.totalorder %s11, 0
    %p141 = por %p139, %p140
    %p142 = scmp.ne.s32.totalorder %s131, %s134
    %p143 = scmp.eq.s32.totalorder %s16, 1
    %p144 = por %p142, %p143
    %p145 = scmp.ne.s32.totalorder %s134, %s135
    %p146 = scmp.eq.s32.totalorder %s16, 0
    %p147 = por %p145, %p146
    %p148 = scmp.ne.s32.totalorder %s134, %s135
    %p149 = scmp.eq.s32.totalorder %s17, 1
    %p150 = por %p148, %p149
    %p152 = scmp.ne.s32.totalorder %s135, %s151
    %p153 = scmp.eq.s32.totalorder %s17, 0
    %p154 = por %p152, %p153
    %p155 = scmp.le.s32.totalorder 1, %s11
    %p156 = scmp.lt.s32.totalorder %s11, 3
    %p157 = pnand %p155, %p156
    %p158 = pneg %p157
    // Predicated region
    $region9: #{level_step.2} parent=5 // pred_check
      _
    $region10: #{level_step.2} parent=5 // pred_check_branch
      %160 = sbr.rel (%p157) target = $region12
    $region11: #{level_step.2} parent=5 // pred_region
      %s161 = ssub.s32 %s11, 1
      // Predicated region
      $region13: #{level_step.2} parent=11 // pred_check
        %p162 = pneg %p58
      $region14: #{level_step.2} parent=11 // pred_check_branch
        %164 = sbr.rel (%p162) target = $region16
      $region15: #{level_step.2} parent=11 // pred_region
        _
      $region16: #{level_step.2} parent=11 // pred_fallthru
        _
      // Predicated region
      $region17: #{level_step.2} parent=11 // pred_check
        %p165 = pneg %p79
      $region18: #{level_step.2} parent=11 // pred_check_branch
        %167 = sbr.rel (%p165) target = $region20
      $region19: #{level_step.2} parent=11 // pred_region
        _
      $region20: #{level_step.2} parent=11 // pred_fallthru
        _
      // Predicated region
      $region21: #{level_step.2} parent=11 // pred_check
        %p168 = pneg %p100
      $region22: #{level_step.2} parent=11 // pred_check_branch
        %170 = sbr.rel (%p168) target = $region24
      $region23: #{level_step.2} parent=11 // pred_region
        _
      $region24: #{level_step.2} parent=11 // pred_fallthru
        _
      // Predicated region
      $region25: #{level_step.2} parent=11 // pred_check
        %p171 = pneg %p121
      $region26: #{level_step.2} parent=11 // pred_check_branch
        %173 = sbr.rel (%p171) target = $region28
      $region27: #{level_step.2} parent=11 // pred_region
        _
      $region28: #{level_step.2} parent=11 // pred_fallthru
        _
    $region12: #{level_step.2} parent=5 // pred_fallthru
      _
    %p174 = scmp.lt.s32.totalorder %s11, 2
    // Predicated region
    $region29: #{level_step.2} parent=5 // pred_check
      %p175 = pneg %p174
    $region30: #{level_step.2} parent=5 // pred_check_branch
      %177 = sbr.rel (%p175) target = $region32
    $region31: #{level_step.2} parent=5 // pred_region
      // Predicated region
      $region33: #{level_step.2} parent=31 // pred_check
        %p178 = pneg %p31
      $region34: #{level_step.2} parent=31 // pred_check_branch
        %180 = sbr.rel (%p178) target = $region36
      $region35: #{level_step.2} parent=31 // pred_region
        %p181 = scmp.lt.s32.totalorder %s11, 1
        %s182 = scalar_select %p181, %s11, 1
        %s183 = smul.addr %s182, 2
        %s184 = smul.addr %s183, 4
        %s185 = scalar_lea.vmem %s0, %s184
      $region36: #{level_step.2} parent=31 // pred_fallthru
        _
    $region32: #{level_step.2} parent=5 // pred_fallthru
      _
    %p186 = scmp.le.s32.totalorder 1, %s11
    %p187 = scmp.lt.s32.totalorder %s11, 3
    %p188 = pnand %p186, %p187
    %p189 = pneg %p188
    // Predicated region
    $region37: #{level_step.2} parent=5 // pred_check
      _
    $region38: #{level_step.2} parent=5 // pred_check_branch
      %191 = sbr.rel (%p188) target = $region40
    $region39: #{level_step.2} parent=5 // pred_region
      %s192 = ssub.s32 %s11, 1
      %p193 = scmp.lt.s32.totalorder %s16, 1
      %s194 = scalar_select %p193, %s16, 1
      %s195 = smul.addr %s194, 2
      %s196 = smul.addr %s195, 4
      %s197 = scalar_lea.vmem %s0, %s196
      %p198 = pneg %p37
      %p199 = pneg %p34
      %p200 = pneg %p58
      %p201 = pneg %p55
      %p202 = pneg %p79
      %p203 = pneg %p76
      %p204 = pneg %p100
      %p205 = pneg %p97
      %p206 = pneg %p121
      %p207 = pneg %p118
      %p208 = pneg %p147
      %p209 = pneg %p144
      %p210 = scmp.lt.s32.totalorder %s16, 1
      %s211 = scalar_select %p210, %s16, 1
      %s212 = smul.addr %s211, 2
      %s213 = smul.addr %s212, 4
      %s214 = scalar_lea.vmem %s5, %s213
      %p215 = scmp.lt.s32.totalorder %s16, 1
      %s216 = scalar_select %p215, %s16, 1
      %s217 = smul.addr %s216, 2
      %s218 = smul.addr %s217, 4
      %s219 = scalar_lea.vmem %s0, %s218
      %p220 = scmp.lt.s32.totalorder %s16, 1
      %s221 = scalar_select %p220, %s16, 1
      %s222 = smul.addr %s221, 2
      %s223 = smul.addr %s222, 4
      %s224 = scalar_lea.vmem %s5, %s223
      %v225 = vld [vmem:[%s1] sm:$0xff]
      %v226 = vld [vmem:[%s1 + $0x8] sm:$0xff]
      %v227 = vld [vmem:[%s1 + $0x10] sm:$0xff]
      %v228 = vld [vmem:[%s1 + $0x18] sm:$0xff]
      %v229 = vld [vmem:[%s1 + $0x20] sm:$0xff]
      %v230 = vld [vmem:[%s1 + $0x28] sm:$0xff]
      %v231 = vld [vmem:[%s1 + $0x30] sm:$0xff]
      %v232 = vld [vmem:[%s1 + $0x38] sm:$0xff]
      %v233 = vld [vmem:[%s1 + $0x40] sm:$0xff]
      %v234 = vld [vmem:[%s1 + $0x48] sm:$0xff]
      %v235 = vld [vmem:[%s1 + $0x50] sm:$0xff]
      %v236 = vld [vmem:[%s1 + $0x58] sm:$0xff]
      %v237 = vld [vmem:[%s1 + $0x60] sm:$0xff]
      %v238 = vld [vmem:[%s1 + $0x68] sm:$0xff]
      %v239 = vld [vmem:[%s1 + $0x70] sm:$0xff]
      %v240 = vld [vmem:[%s1 + $0x78] sm:$0xff]
      %v241 = vld [vmem:[%s1 + $0x80] sm:$0xff]
      %v242 = vld [vmem:[%s1 + $0x88] sm:$0xff]
      %v243 = vld [vmem:[%s1 + $0x90] sm:$0xff]
      %v244 = vld [vmem:[%s1 + $0x98] sm:$0xff]
      %v245 = vld [vmem:[%s1 + $0xa0] sm:$0xff]
      %v246 = vld [vmem:[%s1 + $0xa8] sm:$0xff]
      %v247 = vld [vmem:[%s1 + $0xb0] sm:$0xff]
      %v248 = vld [vmem:[%s1 + $0xb8] sm:$0xff]
      %v249 = vld [vmem:[%s1 + $0xc0] sm:$0xff]
      %v250 = vld [vmem:[%s1 + $0xc8] sm:$0xff]
      %v251 = vld [vmem:[%s1 + $0xd0] sm:$0xff]
      %v252 = vld [vmem:[%s1 + $0xd8] sm:$0xff]
      %v253 = vld [vmem:[%s1 + $0xe0] sm:$0xff]
      %v254 = vld [vmem:[%s1 + $0xe8] sm:$0xff]
      %v255 = vld [vmem:[%s1 + $0xf0] sm:$0xff]
      %v256 = vld [vmem:[%s1 + $0xf8] sm:$0xff]
      %v257 = vld [vmem:[%s219] sm:$0xff]
      %v258 = vld [vmem:[%s2] sm:$0xff]
      %v259 = vld [vmem:[%s2 + $0x8] sm:$0xff]
      %v260 = vld [vmem:[%s2 + $0x10] sm:$0xff]
      %v261 = vld [vmem:[%s2 + $0x18] sm:$0xff]
      %v262 = vld [vmem:[%s2 + $0x20] sm:$0xff]
      %v263 = vld [vmem:[%s2 + $0x28] sm:$0xff]
      %v264 = vld [vmem:[%s2 + $0x30] sm:$0xff]
      %v265 = vld [vmem:[%s2 + $0x38] sm:$0xff]
      %v266 = vld [vmem:[%s2 + $0x40] sm:$0xff]
      %v267 = vld [vmem:[%s2 + $0x48] sm:$0xff]
      %v268 = vld [vmem:[%s2 + $0x50] sm:$0xff]
      %v269 = vld [vmem:[%s2 + $0x58] sm:$0xff]
      %v270 = vld [vmem:[%s2 + $0x60] sm:$0xff]
      %v271 = vld [vmem:[%s2 + $0x68] sm:$0xff]
      %v272 = vld [vmem:[%s2 + $0x70] sm:$0xff]
      %v273 = vld [vmem:[%s2 + $0x78] sm:$0xff]
      %v274 = vld [vmem:[%s2 + $0x80] sm:$0xff]
      %v275 = vld [vmem:[%s2 + $0x88] sm:$0xff]
      %v276 = vld [vmem:[%s2 + $0x90] sm:$0xff]
      %v277 = vld [vmem:[%s2 + $0x98] sm:$0xff]
      %v278 = vld [vmem:[%s2 + $0xa0] sm:$0xff]
      %v279 = vld [vmem:[%s2 + $0xa8] sm:$0xff]
      %v280 = vld [vmem:[%s2 + $0xb0] sm:$0xff]
      %v281 = vld [vmem:[%s2 + $0xb8] sm:$0xff]
      %v282 = vld [vmem:[%s2 + $0xc0] sm:$0xff]
      %v283 = vld [vmem:[%s2 + $0xc8] sm:$0xff]
      %v284 = vld [vmem:[%s2 + $0xd0] sm:$0xff]
      %v285 = vld [vmem:[%s2 + $0xd8] sm:$0xff]
      %v286 = vld [vmem:[%s2 + $0xe0] sm:$0xff]
      %v287 = vld [vmem:[%s2 + $0xe8] sm:$0xff]
      %v288 = vld [vmem:[%s2 + $0xf0] sm:$0xff]
      %v289 = vld [vmem:[%s2 + $0xf8] sm:$0xff]
      %291 = vset.pattern.permute.xlu0 0
      %292 = vperm.xlu0 %291, %v258
      %v293 = vpop.permute.xlu0 %292
      %296 = vset.pattern.permute.xlu0 0
      %297 = vperm.xlu0 %296, %v259
      %v298 = vpop.permute.xlu0 %297
      %301 = vset.pattern.permute.xlu0 0
      %302 = vperm.xlu0 %301, %v260
      %v303 = vpop.permute.xlu0 %302
      %306 = vset.pattern.permute.xlu0 0
      %307 = vperm.xlu0 %306, %v261
      %v308 = vpop.permute.xlu0 %307
      %311 = vset.pattern.permute.xlu0 0
      %312 = vperm.xlu0 %311, %v262
      %v313 = vpop.permute.xlu0 %312
      %316 = vset.pattern.permute.xlu0 0
      %317 = vperm.xlu0 %316, %v263
      %v318 = vpop.permute.xlu0 %317
      %321 = vset.pattern.permute.xlu0 0
      %322 = vperm.xlu0 %321, %v264
      %v323 = vpop.permute.xlu0 %322
      %326 = vset.pattern.permute.xlu0 0
      %327 = vperm.xlu0 %326, %v265
      %v328 = vpop.permute.xlu0 %327
      %331 = vset.pattern.permute.xlu0 0
      %332 = vperm.xlu0 %331, %v266
      %v333 = vpop.permute.xlu0 %332
      %336 = vset.pattern.permute.xlu0 0
      %337 = vperm.xlu0 %336, %v267
      %v338 = vpop.permute.xlu0 %337
      %341 = vset.pattern.permute.xlu0 0
      %342 = vperm.xlu0 %341, %v268
      %v343 = vpop.permute.xlu0 %342
      %346 = vset.pattern.permute.xlu0 0
      %347 = vperm.xlu0 %346, %v269
      %v348 = vpop.permute.xlu0 %347
      %351 = vset.pattern.permute.xlu0 0
      %352 = vperm.xlu0 %351, %v270
      %v353 = vpop.permute.xlu0 %352
      %356 = vset.pattern.permute.xlu0 0
      %357 = vperm.xlu0 %356, %v271
      %v358 = vpop.permute.xlu0 %357
      %361 = vset.pattern.permute.xlu0 0
      %362 = vperm.xlu0 %361, %v272
      %v363 = vpop.permute.xlu0 %362
      %366 = vset.pattern.permute.xlu0 0
      %367 = vperm.xlu0 %366, %v273
      %v368 = vpop.permute.xlu0 %367
      %371 = vset.pattern.permute.xlu0 0
      %372 = vperm.xlu0 %371, %v274
      %v373 = vpop.permute.xlu0 %372
      %376 = vset.pattern.permute.xlu0 0
      %377 = vperm.xlu0 %376, %v275
      %v378 = vpop.permute.xlu0 %377
      %381 = vset.pattern.permute.xlu0 0
      %382 = vperm.xlu0 %381, %v276
      %v383 = vpop.permute.xlu0 %382
      %386 = vset.pattern.permute.xlu0 0
      %387 = vperm.xlu0 %386, %v277
      %v388 = vpop.permute.xlu0 %387
      %391 = vset.pattern.permute.xlu0 0
      %392 = vperm.xlu0 %391, %v278
      %v393 = vpop.permute.xlu0 %392
      %396 = vset.pattern.permute.xlu0 0
      %397 = vperm.xlu0 %396, %v279
      %v398 = vpop.permute.xlu0 %397
      %401 = vset.pattern.permute.xlu0 0
      %402 = vperm.xlu0 %401, %v280
      %v403 = vpop.permute.xlu0 %402
      %406 = vset.pattern.permute.xlu0 0
      %407 = vperm.xlu0 %406, %v281
      %v408 = vpop.permute.xlu0 %407
      %411 = vset.pattern.permute.xlu0 0
      %412 = vperm.xlu0 %411, %v282
      %v413 = vpop.permute.xlu0 %412
      %416 = vset.pattern.permute.xlu0 0
      %417 = vperm.xlu0 %416, %v283
      %v418 = vpop.permute.xlu0 %417
      %421 = vset.pattern.permute.xlu0 0
      %422 = vperm.xlu0 %421, %v284
      %v423 = vpop.permute.xlu0 %422
      %426 = vset.pattern.permute.xlu0 0
      %427 = vperm.xlu0 %426, %v285
      %v428 = vpop.permute.xlu0 %427
      %431 = vset.pattern.permute.xlu0 0
      %432 = vperm.xlu0 %431, %v286
      %v433 = vpop.permute.xlu0 %432
      %436 = vset.pattern.permute.xlu0 0
      %437 = vperm.xlu0 %436, %v287
      %v438 = vpop.permute.xlu0 %437
      %441 = vset.pattern.permute.xlu0 0
      %442 = vperm.xlu0 %441, %v288
      %v443 = vpop.permute.xlu0 %442
      %446 = vset.pattern.permute.xlu0 0
      %447 = vperm.xlu0 %446, %v289
      %v448 = vpop.permute.xlu0 %447
      %v451 = vcombine.high %v257, %v257
      %vm452 = vcmask 31744
      %v454 = vsel %vm452, %v225, 0
      %v457 = vsel %vm452, %v226, 0
      %v460 = vsel %vm452, %v227, 0
      %v463 = vsel %vm452, %v228, 0
      %v466 = vsel %vm452, %v229, 0
      %v469 = vsel %vm452, %v230, 0
      %v472 = vsel %vm452, %v231, 0
      %v475 = vsel %vm452, %v232, 0
      %v478 = vsel %vm452, %v233, 0
      %v481 = vsel %vm452, %v234, 0
      %v484 = vsel %vm452, %v235, 0
      %v487 = vsel %vm452, %v236, 0
      %v490 = vsel %vm452, %v237, 0
      %v493 = vsel %vm452, %v238, 0
      %v496 = vsel %vm452, %v239, 0
      %v499 = vsel %vm452, %v240, 0
      %v502 = vsel %vm452, %v241, 0
      %v505 = vsel %vm452, %v242, 0
      %v508 = vsel %vm452, %v243, 0
      %v511 = vsel %vm452, %v244, 0
      %v514 = vsel %vm452, %v245, 0
      %v517 = vsel %vm452, %v246, 0
      %v520 = vsel %vm452, %v247, 0
      %v523 = vsel %vm452, %v248, 0
      %v526 = vsel %vm452, %v249, 0
      %v529 = vsel %vm452, %v250, 0
      %v532 = vsel %vm452, %v251, 0
      %v535 = vsel %vm452, %v252, 0
      %v538 = vsel %vm452, %v253, 0
      %v541 = vsel %vm452, %v254, 0
      %v544 = vsel %vm452, %v255, 0
      %v547 = vsel %vm452, %v256, 0
      %vm549 = vcmask 1043456
      %v550 = vsel %vm549, %v257, 0
      %v552 = vsel %vm549, %v451, 0
      %554 = vmatprep.subr.mxu0 %v552
      %555 = vmatpush1.msra.mxu0 %v550
      %556 = vmatprep.subr.mxu0 0.0
      %557 = vmatpush1.msra.mxu0 0.0
      %558 = vmatprep.subr.mxu0 0.0
      %559 = vmatpush1.msra.mxu0 0.0
      %560 = vmatprep.subr.mxu0 0.0
      %561 = vmatpush1.msra.mxu0 0.0
      %562 = vmatprep.subr.mxu0 0.0
      %563 = vmatpush1.msra.mxu0 0.0
      %564 = vmatprep.subr.mxu0 0.0
      %565 = vmatpush1.msra.mxu0 0.0
      %566 = vmatprep.subr.mxu0 0.0
      %567 = vmatpush1.msra.mxu0 0.0
      %568 = vmatprep.subr.mxu0 0.0
      %569 = vmatpush1.msra.mxu0 0.0
      %570 = vmatprep.subr.mxu0 0.0
      %571 = vmatpush1.msra.mxu0 0.0
      %572 = vmatprep.subr.mxu0 0.0
      %573 = vmatpush1.msra.mxu0 0.0
      %574 = vmatprep.subr.mxu0 0.0
      %575 = vmatpush1.msra.mxu0 0.0
      %576 = vmatprep.subr.mxu0 0.0
      %577 = vmatpush1.msra.mxu0 0.0
      %578 = vmatprep.subr.mxu0 0.0
      %579 = vmatpush1.msra.mxu0 0.0
      %580 = vmatprep.subr.mxu0 0.0
      %581 = vmatpush1.msra.mxu0 0.0
      %582 = vmatprep.subr.mxu0 0.0
      %583 = vmatpush1.msra.mxu0 0.0
      %584 = vmatprep.subr.mxu0 0.0
      %585 = vmatpush1.msra.mxu0 0.0
      %586 = vmatprep.subr.mxu0 0.0
      %587 = vmatpush1.msra.mxu0 0.0
      %588 = vmatprep.subr.mxu0 0.0
      %589 = vmatpush1.msra.mxu0 0.0
      %590 = vmatprep.subr.mxu0 0.0
      %591 = vmatpush1.msra.mxu0 0.0
      %592 = vmatprep.subr.mxu0 0.0
      %593 = vmatpush1.msra.mxu0 0.0
      %594 = vmatprep.subr.mxu0 0.0
      %595 = vmatpush1.msra.mxu0 0.0
      %596 = vmatprep.subr.mxu0 0.0
      %597 = vmatpush1.msra.mxu0 0.0
      %598 = vmatprep.subr.mxu0 0.0
      %599 = vmatpush1.msra.mxu0 0.0
      %600 = vmatprep.subr.mxu0 0.0
      %601 = vmatpush1.msra.mxu0 0.0
      %602 = vmatprep.subr.mxu0 0.0
      %603 = vmatpush1.msra.mxu0 0.0
      %604 = vmatprep.subr.mxu0 0.0
      %605 = vmatpush1.msra.mxu0 0.0
      %606 = vmatprep.subr.mxu0 0.0
      %607 = vmatpush1.msra.mxu0 0.0
      %608 = vmatprep.subr.mxu0 0.0
      %609 = vmatpush1.msra.mxu0 0.0
      %610 = vmatprep.subr.mxu0 0.0
      %611 = vmatpush1.msra.mxu0 0.0
      %612 = vmatprep.subr.mxu0 0.0
      %613 = vmatpush1.msra.mxu0 0.0
      %614 = vmatprep.subr.mxu0 0.0
      %615 = vmatpush1.msra.mxu0 0.0
      %616 = vmatprep.subr.mxu0 0.0
      %617 = vmatpush1.msra.mxu0 0.0
      %618 = vmatprep.mubr.f32.mxu0 0.0
      %619 = vmatmul.mubr.f32.gmra.mrb[0].mxu0 %v454
      %v620 = vpop.f32.mrb[0].mxu0
      %v621 = vadd.f32 %v293, %v620
      %v622 = vpop.f32.mrb[0].mxu0
      %v623 = vadd.f32 %v293, %v622
      %624 = vmatprep.mubr.f32.mxu0 0.0
      %625 = vmatmul.mubr.f32.gmra.mrb[0].mxu0 %v457
      %v626 = vpop.f32.mrb[0].mxu0
      %v627 = vadd.f32 %v298, %v626
      %v628 = vpop.f32.mrb[0].mxu0
      %v629 = vadd.f32 %v298, %v628
      %630 = vmatprep.mubr.f32.mxu0 0.0
      %631 = vmatmul.mubr.f32.gmra.mrb[0].mxu0 %v460
      %v632 = vpop.f32.mrb[0].mxu0
      %v633 = vadd.f32 %v303, %v632
      %v634 = vpop.f32.mrb[0].mxu0
      %v635 = vadd.f32 %v303, %v634
      %636 = vmatprep.mubr.f32.mxu0 0.0
      %637 = vmatmul.mubr.f32.gmra.mrb[0].mxu0 %v463
      %v638 = vpop.f32.mrb[0].mxu0
      %v639 = vadd.f32 %v308, %v638
      %v640 = vpop.f32.mrb[0].mxu0
      %v641 = vadd.f32 %v308, %v640
      %642 = vmatprep.mubr.f32.mxu0 0.0
      %643 = vmatmul.mubr.f32.gmra.mrb[0].mxu0 %v466
      %v644 = vpop.f32.mrb[0].mxu0
      %v645 = vadd.f32 %v313, %v644
      %v646 = vpop.f32.mrb[0].mxu0
      %v647 = vadd.f32 %v313, %v646
      %648 = vmatprep.mubr.f32.mxu0 0.0
      %649 = vmatmul.mubr.f32.gmra.mrb[0].mxu0 %v469
      %v650 = vpop.f32.mrb[0].mxu0
      %v651 = vadd.f32 %v318, %v650
      %v652 = vpop.f32.mrb[0].mxu0
      %v653 = vadd.f32 %v318, %v652
      %654 = vmatprep.mubr.f32.mxu0 0.0
      %655 = vmatmul.mubr.f32.gmra.mrb[0].mxu0 %v472
      %v656 = vpop.f32.mrb[0].mxu0
      %v657 = vadd.f32 %v323, %v656
      %v658 = vpop.f32.mrb[0].mxu0
      %v659 = vadd.f32 %v323, %v658
      %660 = vmatprep.mubr.f32.mxu0 0.0
      %661 = vmatmul.mubr.f32.gmra.mrb[0].mxu0 %v475
      %v662 = vpop.f32.mrb[0].mxu0
      %v663 = vadd.f32 %v328, %v662
      %v664 = vpop.f32.mrb[0].mxu0
      %v665 = vadd.f32 %v328, %v664
      %666 = vmatprep.mubr.f32.mxu0 0.0
      %667 = vmatmul.mubr.f32.gmra.mrb[0].mxu0 %v478
      %v668 = vpop.f32.mrb[0].mxu0
      %v669 = vadd.f32 %v333, %v668
      %v670 = vpop.f32.mrb[0].mxu0
      %v671 = vadd.f32 %v333, %v670
      %672 = vmatprep.mubr.f32.mxu0 0.0
      %673 = vmatmul.mubr.f32.gmra.mrb[0].mxu0 %v481
      %v674 = vpop.f32.mrb[0].mxu0
      %v675 = vadd.f32 %v338, %v674
      %v676 = vpop.f32.mrb[0].mxu0
      %v677 = vadd.f32 %v338, %v676
      %678 = vmatprep.mubr.f32.mxu0 0.0
      %679 = vmatmul.mubr.f32.gmra.mrb[0].mxu0 %v484
      %v680 = vpop.f32.mrb[0].mxu0
      %v681 = vadd.f32 %v343, %v680
      %v682 = vpop.f32.mrb[0].mxu0
      %v683 = vadd.f32 %v343, %v682
      %684 = vmatprep.mubr.f32.mxu0 0.0
      %685 = vmatmul.mubr.f32.gmra.mrb[0].mxu0 %v487
      %v686 = vpop.f32.mrb[0].mxu0
      %v687 = vadd.f32 %v348, %v686
      %v688 = vpop.f32.mrb[0].mxu0
      %v689 = vadd.f32 %v348, %v688
      %690 = vmatprep.mubr.f32.mxu0 0.0
      %691 = vmatmul.mubr.f32.gmra.mrb[0].mxu0 %v490
      %v692 = vpop.f32.mrb[0].mxu0
      %v693 = vadd.f32 %v353, %v692
      %v694 = vpop.f32.mrb[0].mxu0
      %v695 = vadd.f32 %v353, %v694
      %696 = vmatprep.mubr.f32.mxu0 0.0
      %697 = vmatmul.mubr.f32.gmra.mrb[0].mxu0 %v493
      %v698 = vpop.f32.mrb[0].mxu0
      %v699 = vadd.f32 %v358, %v698
      %v700 = vpop.f32.mrb[0].mxu0
      %v701 = vadd.f32 %v358, %v700
      %702 = vmatprep.mubr.f32.mxu0 0.0
      %703 = vmatmul.mubr.f32.gmra.mrb[0].mxu0 %v496
      %v704 = vpop.f32.mrb[0].mxu0
      %v705 = vadd.f32 %v363, %v704
      %v706 = vpop.f32.mrb[0].mxu0
      %v707 = vadd.f32 %v363, %v706
      %708 = vmatprep.mubr.f32.mxu0 0.0
      %709 = vmatmul.mubr.f32.gmra.mrb[0].mxu0 %v499
      %v710 = vpop.f32.mrb[0].mxu0
      %v711 = vadd.f32 %v368, %v710
      %v712 = vpop.f32.mrb[0].mxu0
      %v713 = vadd.f32 %v368, %v712
      %714 = vmatprep.mubr.f32.mxu0 0.0
      %715 = vmatmul.mubr.f32.gmra.mrb[0].mxu0 %v502
      %v716 = vpop.f32.mrb[0].mxu0
      %v717 = vadd.f32 %v373, %v716
      %v718 = vpop.f32.mrb[0].mxu0
      %v719 = vadd.f32 %v373, %v718
      %720 = vmatprep.mubr.f32.mxu0 0.0
      %721 = vmatmul.mubr.f32.gmra.mrb[0].mxu0 %v505
      %v722 = vpop.f32.mrb[0].mxu0
      %v723 = vadd.f32 %v378, %v722
      %v724 = vpop.f32.mrb[0].mxu0
      %v725 = vadd.f32 %v378, %v724
      %726 = vmatprep.mubr.f32.mxu0 0.0
      %727 = vmatmul.mubr.f32.gmra.mrb[0].mxu0 %v508
      %v728 = vpop.f32.mrb[0].mxu0
      %v729 = vadd.f32 %v383, %v728
      %v730 = vpop.f32.mrb[0].mxu0
      %v731 = vadd.f32 %v383, %v730
      %732 = vmatprep.mubr.f32.mxu0 0.0
      %733 = vmatmul.mubr.f32.gmra.mrb[0].mxu0 %v511
      %v734 = vpop.f32.mrb[0].mxu0
      %v735 = vadd.f32 %v388, %v734
      %v736 = vpop.f32.mrb[0].mxu0
      %v737 = vadd.f32 %v388, %v736
      %738 = vmatprep.mubr.f32.mxu0 0.0
      %739 = vmatmul.mubr.f32.gmra.mrb[0].mxu0 %v514
      %v740 = vpop.f32.mrb[0].mxu0
      %v741 = vadd.f32 %v393, %v740
      %v742 = vpop.f32.mrb[0].mxu0
      %v743 = vadd.f32 %v393, %v742
      %744 = vmatprep.mubr.f32.mxu0 0.0
      %745 = vmatmul.mubr.f32.gmra.mrb[0].mxu0 %v517
      %v746 = vpop.f32.mrb[0].mxu0
      %v747 = vadd.f32 %v398, %v746
      %v748 = vpop.f32.mrb[0].mxu0
      %v749 = vadd.f32 %v398, %v748
      %750 = vmatprep.mubr.f32.mxu0 0.0
      %751 = vmatmul.mubr.f32.gmra.mrb[0].mxu0 %v520
      %v752 = vpop.f32.mrb[0].mxu0
      %v753 = vadd.f32 %v403, %v752
      %v754 = vpop.f32.mrb[0].mxu0
      %v755 = vadd.f32 %v403, %v754
      %756 = vmatprep.mubr.f32.mxu0 0.0
      %757 = vmatmul.mubr.f32.gmra.mrb[0].mxu0 %v523
      %v758 = vpop.f32.mrb[0].mxu0
      %v759 = vadd.f32 %v408, %v758
      %v760 = vpop.f32.mrb[0].mxu0
      %v761 = vadd.f32 %v408, %v760
      %762 = vmatprep.mubr.f32.mxu0 0.0
      %763 = vmatmul.mubr.f32.gmra.mrb[0].mxu0 %v526
      %v764 = vpop.f32.mrb[0].mxu0
      %v765 = vadd.f32 %v413, %v764
      %v766 = vpop.f32.mrb[0].mxu0
      %v767 = vadd.f32 %v413, %v766
      %768 = vmatprep.mubr.f32.mxu0 0.0
      %769 = vmatmul.mubr.f32.gmra.mrb[0].mxu0 %v529
      %v770 = vpop.f32.mrb[0].mxu0
      %v771 = vadd.f32 %v418, %v770
      %v772 = vpop.f32.mrb[0].mxu0
      %v773 = vadd.f32 %v418, %v772
      %774 = vmatprep.mubr.f32.mxu0 0.0
      %775 = vmatmul.mubr.f32.gmra.mrb[0].mxu0 %v532
      %v776 = vpop.f32.mrb[0].mxu0
      %v777 = vadd.f32 %v423, %v776
      %v778 = vpop.f32.mrb[0].mxu0
      %v779 = vadd.f32 %v423, %v778
      %780 = vmatprep.mubr.f32.mxu0 0.0
      %781 = vmatmul.mubr.f32.gmra.mrb[0].mxu0 %v535
      %v782 = vpop.f32.mrb[0].mxu0
      %v783 = vadd.f32 %v428, %v782
      %v784 = vpop.f32.mrb[0].mxu0
      %v785 = vadd.f32 %v428, %v784
      %786 = vmatprep.mubr.f32.mxu0 0.0
      %787 = vmatmul.mubr.f32.gmra.mrb[0].mxu0 %v538
      %v788 = vpop.f32.mrb[0].mxu0
      %v789 = vadd.f32 %v433, %v788
      %v790 = vpop.f32.mrb[0].mxu0
      %v791 = vadd.f32 %v433, %v790
      %792 = vmatprep.mubr.f32.mxu0 0.0
      %793 = vmatmul.mubr.f32.gmra.mrb[0].mxu0 %v541
      %v794 = vpop.f32.mrb[0].mxu0
      %v795 = vadd.f32 %v438, %v794
      %v796 = vpop.f32.mrb[0].mxu0
      %v797 = vadd.f32 %v438, %v796
      %798 = vmatprep.mubr.f32.mxu0 0.0
      %799 = vmatmul.mubr.f32.gmra.mrb[0].mxu0 %v544
      %v800 = vpop.f32.mrb[0].mxu0
      %v801 = vadd.f32 %v443, %v800
      %v802 = vpop.f32.mrb[0].mxu0
      %v803 = vadd.f32 %v443, %v802
      %804 = vmatprep.mubr.f32.mxu0 0.0
      %805 = vmatmul.mubr.f32.gmra.mrb[0].mxu0 %v547
      %v806 = vpop.f32.mrb[0].mxu0
      %v807 = vadd.f32 %v448, %v806
      %v808 = vpop.f32.mrb[0].mxu0
      %v809 = vadd.f32 %v448, %v808
      %810 = vdwg.mxu0
      %v811 = vxor.u32 %v621, 2147483648
      %v812 = vxor.u32 %v623, 2147483648
      %v813 = vxor.u32 %v627, 2147483648
      %v814 = vxor.u32 %v629, 2147483648
      %v815 = vxor.u32 %v633, 2147483648
      %v816 = vxor.u32 %v635, 2147483648
      %v817 = vxor.u32 %v639, 2147483648
      %v818 = vxor.u32 %v641, 2147483648
      %v819 = vxor.u32 %v645, 2147483648
      %v820 = vxor.u32 %v647, 2147483648
      %v821 = vxor.u32 %v651, 2147483648
      %v822 = vxor.u32 %v653, 2147483648
      %v823 = vxor.u32 %v657, 2147483648
      %v824 = vxor.u32 %v659, 2147483648
      %v825 = vxor.u32 %v663, 2147483648
      %v826 = vxor.u32 %v665, 2147483648
      %v827 = vxor.u32 %v669, 2147483648
      %v828 = vxor.u32 %v671, 2147483648
      %v829 = vxor.u32 %v675, 2147483648
      %v830 = vxor.u32 %v677, 2147483648
      %v831 = vxor.u32 %v681, 2147483648
      %v832 = vxor.u32 %v683, 2147483648
      %v833 = vxor.u32 %v687, 2147483648
      %v834 = vxor.u32 %v689, 2147483648
      %v835 = vxor.u32 %v693, 2147483648
      %v836 = vxor.u32 %v695, 2147483648
      %v837 = vxor.u32 %v699, 2147483648
      %v838 = vxor.u32 %v701, 2147483648
      %v839 = vxor.u32 %v705, 2147483648
      %v840 = vxor.u32 %v707, 2147483648
      %v841 = vxor.u32 %v711, 2147483648
      %v842 = vxor.u32 %v713, 2147483648
      %v843 = vxor.u32 %v717, 2147483648
      %v844 = vxor.u32 %v719, 2147483648
      %v845 = vxor.u32 %v723, 2147483648
      %v846 = vxor.u32 %v725, 2147483648
      %v847 = vxor.u32 %v729, 2147483648
      %v848 = vxor.u32 %v731, 2147483648
      %v849 = vxor.u32 %v735, 2147483648
      %v850 = vxor.u32 %v737, 2147483648
      %v851 = vxor.u32 %v741, 2147483648
      %v852 = vxor.u32 %v743, 2147483648
      %v853 = vxor.u32 %v747, 2147483648
      %v854 = vxor.u32 %v749, 2147483648
      %v855 = vxor.u32 %v753, 2147483648
      %v856 = vxor.u32 %v755, 2147483648
      %v857 = vxor.u32 %v759, 2147483648
      %v858 = vxor.u32 %v761, 2147483648
      %v859 = vxor.u32 %v765, 2147483648
      %v860 = vxor.u32 %v767, 2147483648
      %v861 = vxor.u32 %v771, 2147483648
      %v862 = vxor.u32 %v773, 2147483648
      %v863 = vxor.u32 %v777, 2147483648
      %v864 = vxor.u32 %v779, 2147483648
      %v865 = vxor.u32 %v783, 2147483648
      %v866 = vxor.u32 %v785, 2147483648
      %v867 = vxor.u32 %v789, 2147483648
      %v868 = vxor.u32 %v791, 2147483648
      %v869 = vxor.u32 %v795, 2147483648
      %v870 = vxor.u32 %v797, 2147483648
      %v871 = vxor.u32 %v801, 2147483648
      %v872 = vxor.u32 %v803, 2147483648
      %v873 = vxor.u32 %v807, 2147483648
      %v874 = vxor.u32 %v809, 2147483648
      %v875 = vmul.f32 %v811, 1.442695
      %v876 = vpow.pop %v875
      %v877 = vmul.f32 %v812, 1.442695
      %v878 = vpow.pop %v877
      %v879 = vmul.f32 %v813, 1.442695
      %v880 = vpow.pop %v879
      %v881 = vmul.f32 %v814, 1.442695
      %v882 = vpow.pop %v881
      %v883 = vmul.f32 %v815, 1.442695
      %v884 = vpow.pop %v883
      %v885 = vmul.f32 %v816, 1.442695
      %v886 = vpow.pop %v885
      %v887 = vmul.f32 %v817, 1.442695
      %v888 = vpow.pop %v887
      %v889 = vmul.f32 %v818, 1.442695
      %v890 = vpow.pop %v889
      %v891 = vmul.f32 %v819, 1.442695
      %v892 = vpow.pop %v891
      %v893 = vmul.f32 %v820, 1.442695
      %v894 = vpow.pop %v893
      %v895 = vmul.f32 %v821, 1.442695
      %v896 = vpow.pop %v895
      %v897 = vmul.f32 %v822, 1.442695
      %v898 = vpow.pop %v897
      %v899 = vmul.f32 %v823, 1.442695
      %v900 = vpow.pop %v899
      %v901 = vmul.f32 %v824, 1.442695
      %v902 = vpow.pop %v901
      %v903 = vmul.f32 %v825, 1.442695
      %v904 = vpow.pop %v903
      %v905 = vmul.f32 %v826, 1.442695
      %v906 = vpow.pop %v905
      %v907 = vmul.f32 %v827, 1.442695
      %v908 = vpow.pop %v907
      %v909 = vmul.f32 %v828, 1.442695
      %v910 = vpow.pop %v909
      %v911 = vmul.f32 %v829, 1.442695
      %v912 = vpow.pop %v911
      %v913 = vmul.f32 %v830, 1.442695
      %v914 = vpow.pop %v913
      %v915 = vmul.f32 %v831, 1.442695
      %v916 = vpow.pop %v915
      %v917 = vmul.f32 %v832, 1.442695
      %v918 = vpow.pop %v917
      %v919 = vmul.f32 %v833, 1.442695
      %v920 = vpow.pop %v919
      %v921 = vmul.f32 %v834, 1.442695
      %v922 = vpow.pop %v921
      %v923 = vmul.f32 %v835, 1.442695
      %v924 = vpow.pop %v923
      %v925 = vmul.f32 %v836, 1.442695
      %v926 = vpow.pop %v925
      %v927 = vmul.f32 %v837, 1.442695
      %v928 = vpow.pop %v927
      %v929 = vmul.f32 %v838, 1.442695
      %v930 = vpow.pop %v929
      %v931 = vmul.f32 %v839, 1.442695
      %v932 = vpow.pop %v931
      %v933 = vmul.f32 %v840, 1.442695
      %v934 = vpow.pop %v933
      %v935 = vmul.f32 %v841, 1.442695
      %v936 = vpow.pop %v935
      %v937 = vmul.f32 %v842, 1.442695
      %v938 = vpow.pop %v937
      %v939 = vmul.f32 %v843, 1.442695
      %v940 = vpow.pop %v939
      %v941 = vmul.f32 %v844, 1.442695
      %v942 = vpow.pop %v941
      %v943 = vmul.f32 %v845, 1.442695
      %v944 = vpow.pop %v943
      %v945 = vmul.f32 %v846, 1.442695
      %v946 = vpow.pop %v945
      %v947 = vmul.f32 %v847, 1.442695
      %v948 = vpow.pop %v947
      %v949 = vmul.f32 %v848, 1.442695
      %v950 = vpow.pop %v949
      %v951 = vmul.f32 %v849, 1.442695
      %v952 = vpow.pop %v951
      %v953 = vmul.f32 %v850, 1.442695
      %v954 = vpow.pop %v953
      %v955 = vmul.f32 %v851, 1.442695
      %v956 = vpow.pop %v955
      %v957 = vmul.f32 %v852, 1.442695
      %v958 = vpow.pop %v957
      %v959 = vmul.f32 %v853, 1.442695
      %v960 = vpow.pop %v959
      %v961 = vmul.f32 %v854, 1.442695
      %v962 = vpow.pop %v961
      %v963 = vmul.f32 %v855, 1.442695
      %v964 = vpow.pop %v963
      %v965 = vmul.f32 %v856, 1.442695
      %v966 = vpow.pop %v965
      %v967 = vmul.f32 %v857, 1.442695
      %v968 = vpow.pop %v967
      %v969 = vmul.f32 %v858, 1.442695
      %v970 = vpow.pop %v969
      %v971 = vmul.f32 %v859, 1.442695
      %v972 = vpow.pop %v971
      %v973 = vmul.f32 %v860, 1.442695
      %v974 = vpow.pop %v973
      %v975 = vmul.f32 %v861, 1.442695
      %v976 = vpow.pop %v975
      %v977 = vmul.f32 %v862, 1.442695
      %v978 = vpow.pop %v977
      %v979 = vmul.f32 %v863, 1.442695
      %v980 = vpow.pop %v979
      %v981 = vmul.f32 %v864, 1.442695
      %v982 = vpow.pop %v981
      %v983 = vmul.f32 %v865, 1.442695
      %v984 = vpow.pop %v983
      %v985 = vmul.f32 %v866, 1.442695
      %v986 = vpow.pop %v985
      %v987 = vmul.f32 %v867, 1.442695
      %v988 = vpow.pop %v987
      %v989 = vmul.f32 %v868, 1.442695
      %v990 = vpow.pop %v989
      %v991 = vmul.f32 %v869, 1.442695
      %v992 = vpow.pop %v991
      %v993 = vmul.f32 %v870, 1.442695
      %v994 = vpow.pop %v993
      %v995 = vmul.f32 %v871, 1.442695
      %v996 = vpow.pop %v995
      %v997 = vmul.f32 %v872, 1.442695
      %v998 = vpow.pop %v997
      %v999 = vmul.f32 %v873, 1.442695
      %v1000 = vpow.pop %v999
      %v1001 = vmul.f32 %v874, 1.442695
      %v1002 = vpow.pop %v1001
      %v1003 = vadd.f32 %v876, 1.0
      %v1004 = vadd.f32 %v878, 1.0
      %v1005 = vadd.f32 %v880, 1.0
      %v1006 = vadd.f32 %v882, 1.0
      %v1007 = vadd.f32 %v884, 1.0
      %v1008 = vadd.f32 %v886, 1.0
      %v1009 = vadd.f32 %v888, 1.0
      %v1010 = vadd.f32 %v890, 1.0
      %v1011 = vadd.f32 %v892, 1.0
      %v1012 = vadd.f32 %v894, 1.0
      %v1013 = vadd.f32 %v896, 1.0
      %v1014 = vadd.f32 %v898, 1.0
      %v1015 = vadd.f32 %v900, 1.0
      %v1016 = vadd.f32 %v902, 1.0
      %v1017 = vadd.f32 %v904, 1.0
      %v1018 = vadd.f32 %v906, 1.0
      %v1019 = vadd.f32 %v908, 1.0
      %v1020 = vadd.f32 %v910, 1.0
      %v1021 = vadd.f32 %v912, 1.0
      %v1022 = vadd.f32 %v914, 1.0
      %v1023 = vadd.f32 %v916, 1.0
      %v1024 = vadd.f32 %v918, 1.0
      %v1025 = vadd.f32 %v920, 1.0
      %v1026 = vadd.f32 %v922, 1.0
      %v1027 = vadd.f32 %v924, 1.0
      %v1028 = vadd.f32 %v926, 1.0
      %v1029 = vadd.f32 %v928, 1.0
      %v1030 = vadd.f32 %v930, 1.0
      %v1031 = vadd.f32 %v932, 1.0
      %v1032 = vadd.f32 %v934, 1.0
      %v1033 = vadd.f32 %v936, 1.0
      %v1034 = vadd.f32 %v938, 1.0
      %v1035 = vadd.f32 %v940, 1.0
      %v1036 = vadd.f32 %v942, 1.0
      %v1037 = vadd.f32 %v944, 1.0
      %v1038 = vadd.f32 %v946, 1.0
      %v1039 = vadd.f32 %v948, 1.0
      %v1040 = vadd.f32 %v950, 1.0
      %v1041 = vadd.f32 %v952, 1.0
      %v1042 = vadd.f32 %v954, 1.0
      %v1043 = vadd.f32 %v956, 1.0
      %v1044 = vadd.f32 %v958, 1.0
      %v1045 = vadd.f32 %v960, 1.0
      %v1046 = vadd.f32 %v962, 1.0
      %v1047 = vadd.f32 %v964, 1.0
      %v1048 = vadd.f32 %v966, 1.0
      %v1049 = vadd.f32 %v968, 1.0
      %v1050 = vadd.f32 %v970, 1.0
      %v1051 = vadd.f32 %v972, 1.0
      %v1052 = vadd.f32 %v974, 1.0
      %v1053 = vadd.f32 %v976, 1.0
      %v1054 = vadd.f32 %v978, 1.0
      %v1055 = vadd.f32 %v980, 1.0
      %v1056 = vadd.f32 %v982, 1.0
      %v1057 = vadd.f32 %v984, 1.0
      %v1058 = vadd.f32 %v986, 1.0
      %v1059 = vadd.f32 %v988, 1.0
      %v1060 = vadd.f32 %v990, 1.0
      %v1061 = vadd.f32 %v992, 1.0
      %v1062 = vadd.f32 %v994, 1.0
      %v1063 = vadd.f32 %v996, 1.0
      %v1064 = vadd.f32 %v998, 1.0
      %v1065 = vadd.f32 %v1000, 1.0
      %v1066 = vadd.f32 %v1002, 1.0
      %v1067 = vrcp.pop %v1003
      %v1068 = vmul.f32 1.0, %v1067
      %v1069 = vrcp.pop %v1004
      %v1070 = vmul.f32 1.0, %v1069
      %v1071 = vrcp.pop %v1005
      %v1072 = vmul.f32 1.0, %v1071
      %v1073 = vrcp.pop %v1006
      %v1074 = vmul.f32 1.0, %v1073
      %v1075 = vrcp.pop %v1007
      %v1076 = vmul.f32 1.0, %v1075
      %v1077 = vrcp.pop %v1008
      %v1078 = vmul.f32 1.0, %v1077
      %v1079 = vrcp.pop %v1009
      %v1080 = vmul.f32 1.0, %v1079
      %v1081 = vrcp.pop %v1010
      %v1082 = vmul.f32 1.0, %v1081
      %v1083 = vrcp.pop %v1011
      %v1084 = vmul.f32 1.0, %v1083
      %v1085 = vrcp.pop %v1012
      %v1086 = vmul.f32 1.0, %v1085
      %v1087 = vrcp.pop %v1013
      %v1088 = vmul.f32 1.0, %v1087
      %v1089 = vrcp.pop %v1014
      %v1090 = vmul.f32 1.0, %v1089
      %v1091 = vrcp.pop %v1015
      %v1092 = vmul.f32 1.0, %v1091
      %v1093 = vrcp.pop %v1016
      %v1094 = vmul.f32 1.0, %v1093
      %v1095 = vrcp.pop %v1017
      %v1096 = vmul.f32 1.0, %v1095
      %v1097 = vrcp.pop %v1018
      %v1098 = vmul.f32 1.0, %v1097
      %v1099 = vrcp.pop %v1019
      %v1100 = vmul.f32 1.0, %v1099
      %v1101 = vrcp.pop %v1020
      %v1102 = vmul.f32 1.0, %v1101
      %v1103 = vrcp.pop %v1021
      %v1104 = vmul.f32 1.0, %v1103
      %v1105 = vrcp.pop %v1022
      %v1106 = vmul.f32 1.0, %v1105
      %v1107 = vrcp.pop %v1023
      %v1108 = vmul.f32 1.0, %v1107
      %v1109 = vrcp.pop %v1024
      %v1110 = vmul.f32 1.0, %v1109
      %v1111 = vrcp.pop %v1025
      %v1112 = vmul.f32 1.0, %v1111
      %v1113 = vrcp.pop %v1026
      %v1114 = vmul.f32 1.0, %v1113
      %v1115 = vrcp.pop %v1027
      %v1116 = vmul.f32 1.0, %v1115
      %v1117 = vrcp.pop %v1028
      %v1118 = vmul.f32 1.0, %v1117
      %v1119 = vrcp.pop %v1029
      %v1120 = vmul.f32 1.0, %v1119
      %v1121 = vrcp.pop %v1030
      %v1122 = vmul.f32 1.0, %v1121
      %v1123 = vrcp.pop %v1031
      %v1124 = vmul.f32 1.0, %v1123
      %v1125 = vrcp.pop %v1032
      %v1126 = vmul.f32 1.0, %v1125
      %v1127 = vrcp.pop %v1033
      %v1128 = vmul.f32 1.0, %v1127
      %v1129 = vrcp.pop %v1034
      %v1130 = vmul.f32 1.0, %v1129
      %v1131 = vrcp.pop %v1035
      %v1132 = vmul.f32 1.0, %v1131
      %v1133 = vrcp.pop %v1036
      %v1134 = vmul.f32 1.0, %v1133
      %v1135 = vrcp.pop %v1037
      %v1136 = vmul.f32 1.0, %v1135
      %v1137 = vrcp.pop %v1038
      %v1138 = vmul.f32 1.0, %v1137
      %v1139 = vrcp.pop %v1039
      %v1140 = vmul.f32 1.0, %v1139
      %v1141 = vrcp.pop %v1040
      %v1142 = vmul.f32 1.0, %v1141
      %v1143 = vrcp.pop %v1041
      %v1144 = vmul.f32 1.0, %v1143
      %v1145 = vrcp.pop %v1042
      %v1146 = vmul.f32 1.0, %v1145
      %v1147 = vrcp.pop %v1043
      %v1148 = vmul.f32 1.0, %v1147
      %v1149 = vrcp.pop %v1044
      %v1150 = vmul.f32 1.0, %v1149
      %v1151 = vrcp.pop %v1045
      %v1152 = vmul.f32 1.0, %v1151
      %v1153 = vrcp.pop %v1046
      %v1154 = vmul.f32 1.0, %v1153
      %v1155 = vrcp.pop %v1047
      %v1156 = vmul.f32 1.0, %v1155
      %v1157 = vrcp.pop %v1048
      %v1158 = vmul.f32 1.0, %v1157
      %v1159 = vrcp.pop %v1049
      %v1160 = vmul.f32 1.0, %v1159
      %v1161 = vrcp.pop %v1050
      %v1162 = vmul.f32 1.0, %v1161
      %v1163 = vrcp.pop %v1051
      %v1164 = vmul.f32 1.0, %v1163
      %v1165 = vrcp.pop %v1052
      %v1166 = vmul.f32 1.0, %v1165
      %v1167 = vrcp.pop %v1053
      %v1168 = vmul.f32 1.0, %v1167
      %v1169 = vrcp.pop %v1054
      %v1170 = vmul.f32 1.0, %v1169
      %v1171 = vrcp.pop %v1055
      %v1172 = vmul.f32 1.0, %v1171
      %v1173 = vrcp.pop %v1056
      %v1174 = vmul.f32 1.0, %v1173
      %v1175 = vrcp.pop %v1057
      %v1176 = vmul.f32 1.0, %v1175
      %v1177 = vrcp.pop %v1058
      %v1178 = vmul.f32 1.0, %v1177
      %v1179 = vrcp.pop %v1059
      %v1180 = vmul.f32 1.0, %v1179
      %v1181 = vrcp.pop %v1060
      %v1182 = vmul.f32 1.0, %v1181
      %v1183 = vrcp.pop %v1061
      %v1184 = vmul.f32 1.0, %v1183
      %v1185 = vrcp.pop %v1062
      %v1186 = vmul.f32 1.0, %v1185
      %v1187 = vrcp.pop %v1063
      %v1188 = vmul.f32 1.0, %v1187
      %v1189 = vrcp.pop %v1064
      %v1190 = vmul.f32 1.0, %v1189
      %v1191 = vrcp.pop %v1065
      %v1192 = vmul.f32 1.0, %v1191
      %v1193 = vrcp.pop %v1066
      %v1194 = vmul.f32 1.0, %v1193
      %v1195 = vmul.f32 %v621, %v1068
      %v1196 = vmul.f32 %v623, %v1070
      %v1197 = vmul.f32 %v627, %v1072
      %v1198 = vmul.f32 %v629, %v1074
      %v1199 = vmul.f32 %v633, %v1076
      %v1200 = vmul.f32 %v635, %v1078
      %v1201 = vmul.f32 %v639, %v1080
      %v1202 = vmul.f32 %v641, %v1082
      %v1203 = vmul.f32 %v645, %v1084
      %v1204 = vmul.f32 %v647, %v1086
      %v1205 = vmul.f32 %v651, %v1088
      %v1206 = vmul.f32 %v653, %v1090
      %v1207 = vmul.f32 %v657, %v1092
      %v1208 = vmul.f32 %v659, %v1094
      %v1209 = vmul.f32 %v663, %v1096
      %v1210 = vmul.f32 %v665, %v1098
      %v1211 = vmul.f32 %v669, %v1100
      %v1212 = vmul.f32 %v671, %v1102
      %v1213 = vmul.f32 %v675, %v1104
      %v1214 = vmul.f32 %v677, %v1106
      %v1215 = vmul.f32 %v681, %v1108
      %v1216 = vmul.f32 %v683, %v1110
      %v1217 = vmul.f32 %v687, %v1112
      %v1218 = vmul.f32 %v689, %v1114
      %v1219 = vmul.f32 %v693, %v1116
      %v1220 = vmul.f32 %v695, %v1118
      %v1221 = vmul.f32 %v699, %v1120
      %v1222 = vmul.f32 %v701, %v1122
      %v1223 = vmul.f32 %v705, %v1124
      %v1224 = vmul.f32 %v707, %v1126
      %v1225 = vmul.f32 %v711, %v1128
      %v1226 = vmul.f32 %v713, %v1130
      %v1227 = vmul.f32 %v717, %v1132
      %v1228 = vmul.f32 %v719, %v1134
      %v1229 = vmul.f32 %v723, %v1136
      %v1230 = vmul.f32 %v725, %v1138
      %v1231 = vmul.f32 %v729, %v1140
      %v1232 = vmul.f32 %v731, %v1142
      %v1233 = vmul.f32 %v735, %v1144
      %v1234 = vmul.f32 %v737, %v1146
      %v1235 = vmul.f32 %v741, %v1148
      %v1236 = vmul.f32 %v743, %v1150
      %v1237 = vmul.f32 %v747, %v1152
      %v1238 = vmul.f32 %v749, %v1154
      %v1239 = vmul.f32 %v753, %v1156
      %v1240 = vmul.f32 %v755, %v1158
      %v1241 = vmul.f32 %v759, %v1160
      %v1242 = vmul.f32 %v761, %v1162
      %v1243 = vmul.f32 %v765, %v1164
      %v1244 = vmul.f32 %v767, %v1166
      %v1245 = vmul.f32 %v771, %v1168
      %v1246 = vmul.f32 %v773, %v1170
      %v1247 = vmul.f32 %v777, %v1172
      %v1248 = vmul.f32 %v779, %v1174
      %v1249 = vmul.f32 %v783, %v1176
      %v1250 = vmul.f32 %v785, %v1178
      %v1251 = vmul.f32 %v789, %v1180
      %v1252 = vmul.f32 %v791, %v1182
      %v1253 = vmul.f32 %v795, %v1184
      %v1254 = vmul.f32 %v797, %v1186
      %v1255 = vmul.f32 %v801, %v1188
      %v1256 = vmul.f32 %v803, %v1190
      %v1257 = vmul.f32 %v807, %v1192
      %v1258 = vmul.f32 %v809, %v1194
      %v1259 = vld [vmem:[%s3] sm:$0xff]
      %v1260 = vld [vmem:[%s4] sm:$0xf]
      %1262 = vset.pattern.permute.xlu0 0
      %1263 = vperm.xlu0 %1262, %v1260
      %v1264 = vpop.permute.xlu0 %1263
      %v1267 = vcombine.high %v1259, %v1259
      %1269 = vmatprep.subr.mxu0 %v1196
      %1270 = vmatpush1.msra.mxu0 %v1195
      %1271 = vmatprep.subr.mxu0 %v1198
      %1272 = vmatpush1.msra.mxu0 %v1197
      %1273 = vmatprep.subr.mxu0 %v1200
      %1274 = vmatpush1.msra.mxu0 %v1199
      %1275 = vmatprep.subr.mxu0 %v1202
      %1276 = vmatpush1.msra.mxu0 %v1201
      %1277 = vmatprep.subr.mxu0 %v1204
      %1278 = vmatpush1.msra.mxu0 %v1203
      %1279 = vmatprep.subr.mxu0 %v1206
      %1280 = vmatpush1.msra.mxu0 %v1205
      %1281 = vmatprep.subr.mxu0 %v1208
      %1282 = vmatpush1.msra.mxu0 %v1207
      %1283 = vmatprep.subr.mxu0 %v1210
      %1284 = vmatpush1.msra.mxu0 %v1209
      %1285 = vmatprep.subr.mxu0 %v1212
      %1286 = vmatpush1.msra.mxu0 %v1211
      %1287 = vmatprep.subr.mxu0 %v1214
      %1288 = vmatpush1.msra.mxu0 %v1213
      %1289 = vmatprep.subr.mxu0 %v1216
      %1290 = vmatpush1.msra.mxu0 %v1215
      %1291 = vmatprep.subr.mxu0 %v1218
      %1292 = vmatpush1.msra.mxu0 %v1217
      %1293 = vmatprep.subr.mxu0 %v1220
      %1294 = vmatpush1.msra.mxu0 %v1219
      %1295 = vmatprep.subr.mxu0 %v1222
      %1296 = vmatpush1.msra.mxu0 %v1221
      %1297 = vmatprep.subr.mxu0 %v1224
      %1298 = vmatpush1.msra.mxu0 %v1223
      %1299 = vmatprep.subr.mxu0 %v1226
      %1300 = vmatpush1.msra.mxu0 %v1225
      %1301 = vmatprep.subr.mxu0 %v1228
      %1302 = vmatpush1.msra.mxu0 %v1227
      %1303 = vmatprep.subr.mxu0 %v1230
      %1304 = vmatpush1.msra.mxu0 %v1229
      %1305 = vmatprep.subr.mxu0 %v1232
      %1306 = vmatpush1.msra.mxu0 %v1231
      %1307 = vmatprep.subr.mxu0 %v1234
      %1308 = vmatpush1.msra.mxu0 %v1233
      %1309 = vmatprep.subr.mxu0 %v1236
      %1310 = vmatpush1.msra.mxu0 %v1235
      %1311 = vmatprep.subr.mxu0 %v1238
      %1312 = vmatpush1.msra.mxu0 %v1237
      %1313 = vmatprep.subr.mxu0 %v1240
      %1314 = vmatpush1.msra.mxu0 %v1239
      %1315 = vmatprep.subr.mxu0 %v1242
      %1316 = vmatpush1.msra.mxu0 %v1241
      %1317 = vmatprep.subr.mxu0 %v1244
      %1318 = vmatpush1.msra.mxu0 %v1243
      %1319 = vmatprep.subr.mxu0 %v1246
      %1320 = vmatpush1.msra.mxu0 %v1245
      %1321 = vmatprep.subr.mxu0 %v1248
      %1322 = vmatpush1.msra.mxu0 %v1247
      %1323 = vmatprep.subr.mxu0 %v1250
      %1324 = vmatpush1.msra.mxu0 %v1249
      %1325 = vmatprep.subr.mxu0 %v1252
      %1326 = vmatpush1.msra.mxu0 %v1251
      %1327 = vmatprep.subr.mxu0 %v1254
      %1328 = vmatpush1.msra.mxu0 %v1253
      %1329 = vmatprep.subr.mxu0 %v1256
      %1330 = vmatpush1.msra.mxu0 %v1255
      %1331 = vmatprep.subr.mxu0 %v1258
      %1332 = vmatpush1.msra.mxu0 %v1257
      %1333 = vmatprep.mubr.f32.mxu0 %v1267
      %1334 = vmatmul.mubr.f32.gmra.mrb[0].mxu0 %v1259
      %v1335 = vpop.f32.mrb[0].mxu0
      %v1336 = vadd.f32 %v1264, %v1335
      %v1337 = vpop.f32.mrb[0].mxu0
      %v1338 = vadd.f32 %v1264, %v1337
      %1339 = vdwg.mxu0
      %v1342 = vcombine.low %v1336, %v1338
      %1344 = vst [vmem:[%s224] sm:$0xff] %v1342
      %p1345 = scmp.lt.s32.totalorder %s16, 1
      %s1346 = scalar_select %p1345, %s16, 1
      %s1347 = smul.addr %s1346, 2
      %s1348 = smul.addr %s1347, 4
      %s1349 = scalar_lea.vmem %s5, %s1348
      // Predicated region
      $region41: #{level_step.2} parent=39 // pred_check
        %p1350 = pneg %p144
      $region42: #{level_step.2} parent=39 // pred_check_branch
        %1352 = sbr.rel (%p1350) target = $region44
      $region43: #{level_step.2} parent=39 // pred_region
        _
      $region44: #{level_step.2} parent=39 // pred_fallthru
        _
    $region40: #{level_step.2} parent=5 // pred_fallthru
      _
    %p1353 = scmp.le.s32.totalorder 2, %s11
    // Predicated region
    $region45: #{level_step.2} parent=5 // pred_check
      %p1354 = pneg %p1353
    $region46: #{level_step.2} parent=5 // pred_check_branch
      %1356 = sbr.rel (%p1354) target = $region48
    $region47: #{level_step.2} parent=5 // pred_region
      %s1357 = ssub.s32 %s11, 2
      // Predicated region
      $region49: #{level_step.2} parent=47 // pred_check
        %p1358 = pneg %p150
      $region50: #{level_step.2} parent=47 // pred_check_branch
        %1360 = sbr.rel (%p1358) target = $region52
      $region51: #{level_step.2} parent=47 // pred_region
        %p1361 = scmp.lt.s32.totalorder %s17, 1
        %s1362 = scalar_select %p1361, %s17, 1
        %s1363 = smul.addr %s1362, 2
        %s1364 = smul.addr %s1363, 4
        %s1365 = scalar_lea.vmem %s5, %s1364
      $region52: #{level_step.2} parent=47 // pred_fallthru
        _
    $region48: #{level_step.2} parent=5 // pred_fallthru
      _
  $region6: #{level_step.2} parent=0 // loop_footer
    %s15 = sadd.s32 1, %s11
  $region7: #{level_step.2} parent=0 // loop_footer_branch
    %10 = sbr.rel target = $region3
  $region8: #{level_step.2} parent=0 // loop_exit
    _

// kernel: level_step.3
$region0: #{level_step.3}
  #allocation0 [shape = 'u32[]', space=smem, size = 0x4, offset = 0x4, fixed_abs, tag = 'smem constant byte address 0x4 - core index']
  #allocation1 [shape = 'u32[144,128]{1,0:T(1,128)}', space=vmem, size = 0x12000, scoped, tag = 'internal scratch']
  %s0 = inlined_call_operand.vmem [shape: f32[2,12,256], index: 0, kind: input, shape index: {}]
  %s1 = inlined_call_operand.vmem [shape: bf16[2,240,256], index: 1, kind: input, shape index: {}]
  %s2 = inlined_call_operand.vmem [shape: f32[2,4,256], index: 2, kind: input, shape index: {}]
  %s3 = inlined_call_operand.vmem [shape: f32[2,1,256], index: 3, kind: input, shape index: {}]
  %s4 = inlined_call_operand.vmem [shape: bf16[32,240], index: 4, kind: input, shape index: {}]
  %s5 = inlined_call_operand.vmem [shape: f32[32,1], index: 5, kind: input, shape index: {}]
  %s6 = inlined_call_operand.vmem [shape: f32[32,1], index: 6, kind: input, shape index: {}]
  %s7 = inlined_call_operand.vmem [shape: f32[32,1], index: 7, kind: input, shape index: {}]
  %s8 = inlined_call_operand.vmem [shape: f32[12,32], index: 8, kind: input, shape index: {}]
  %s9 = inlined_call_operand.vmem [shape: f32[12,4], index: 9, kind: input, shape index: {}]
  %s10 = inlined_call_operand.vmem [shape: f32[12,1], index: 10, kind: input, shape index: {}]
  %s11 = inlined_call_operand.vmem [shape: f32[2,12,256], index: 11, kind: output, shape index: {}]
  %s12 = sld [smem:[#allocation0]]
  $region77: #{level_step.3} parent=0
    _
  %s14 = ssub.s32 1, %s12
  %s15 = scalar_select 0, %s14, %s12
  loop: start=0, step=1, limit=4
  $region2: #{level_step.3} parent=0 // loop_pre_header
    _
  $region3: #{level_step.3} parent=0 // loop_header
    %s17 = sphi 0, %s21
    %p18 = scmp.ge.s32.totalorder %s17, 4
    %s27 = sphi 0, %s29
    %s30 = sphi 0, %s27
    %s31 = sphi 0, %s30
    %s47 = sphi 0, %s31
    %s53 = sphi 0, %s55
    %s56 = sphi 0, %s53
    %s57 = sphi 0, %s56
    %s73 = sphi 0, %s57
    %s79 = sphi 0, %s81
    %s82 = sphi 0, %s79
    %s83 = sphi 0, %s82
    %s99 = sphi 0, %s83
    %s105 = sphi 0, %s107
    %s108 = sphi 0, %s105
    %s109 = sphi 0, %s108
    %s125 = sphi 0, %s109
    %s129 = sphi 0, %s129
    %s131 = sphi 0, %s129
    %s132 = sphi 0, %s131
    %s146 = sphi 0, %s132
    %s150 = sphi 0, %s150
    %s152 = sphi 0, %s150
    %s153 = sphi 0, %s152
    %s167 = sphi 0, %s153
    %s171 = sphi 0, %s171
    %s173 = sphi 0, %s171
    %s174 = sphi 0, %s173
    %s188 = sphi 0, %s174
    %s192 = sphi 0, %s192
    %s194 = sphi 0, %s192
    %s195 = sphi 0, %s194
    %s209 = sphi 0, %s195
    %s213 = sphi 0, %s213
    %s215 = sphi 0, %s213
    %s216 = sphi 0, %s215
    %s230 = sphi 0, %s216
    %s234 = sphi 0, %s234
    %s236 = sphi 0, %s234
    %s237 = sphi 0, %s236
    %s251 = sphi 0, %s237
    %s255 = sphi 0, %s255
    %s257 = sphi 0, %s255
    %s258 = sphi 0, %s257
    %s272 = sphi 0, %s258
    %s278 = sphi 0, %s280
    %s281 = sphi 0, %s278
    %s282 = sphi 0, %s281
    %s298 = sphi 0, %s282
  $region4: #{level_step.3} parent=0 // loop_header_branch
    %20 = sbr.rel (%p18) target = $region8
  $region5: #{level_step.3} parent=0 // loop_body
    %s22 = ssub.s32 %s17, 1
    %s23 = ssub.s32 %s17, 2
    %s24 = sadd.s32 %s17, 1
    %s25 = ssub.s32 %s17, %s24
    %p26 = scmp.eq.s32.totalorder %s25, 0
    %s28 = sadd.s32 %s27, 1
    %s29 = scalar_select %p26, %s27, %s28
    %p32 = pneg %p26
    %p33 = scmp.eq.s32.totalorder %s17, 1
    %p34 = por %p32, %p33
    %p35 = scmp.ne.s32.totalorder %s27, %s30
    %p36 = scmp.eq.s32.totalorder %s17, 0
    %p37 = por %p35, %p36
    %p38 = scmp.ne.s32.totalorder %s27, %s30
    %p39 = scmp.eq.s32.totalorder %s22, 1
    %p40 = por %p38, %p39
    %p41 = scmp.ne.s32.totalorder %s30, %s31
    %p42 = scmp.eq.s32.totalorder %s22, 0
    %p43 = por %p41, %p42
    %p44 = scmp.ne.s32.totalorder %s30, %s31
    %p45 = scmp.eq.s32.totalorder %s23, 1
    %p46 = por %p44, %p45
    %p48 = scmp.ne.s32.totalorder %s31, %s47
    %p49 = scmp.eq.s32.totalorder %s23, 0
    %p50 = por %p48, %p49
    %s51 = ssub.s32 %s17, %s24
    %p52 = scmp.eq.s32.totalorder %s51, 0
    %s54 = sadd.s32 %s53, 1
    %s55 = scalar_select %p52, %s53, %s54
    %p58 = pneg %p52
    %p59 = scmp.eq.s32.totalorder %s17, 1
    %p60 = por %p58, %p59
    %p61 = scmp.ne.s32.totalorder %s53, %s56
    %p62 = scmp.eq.s32.totalorder %s17, 0
    %p63 = por %p61, %p62
    %p64 = scmp.ne.s32.totalorder %s53, %s56
    %p65 = scmp.eq.s32.totalorder %s22, 1
    %p66 = por %p64, %p65
    %p67 = scmp.ne.s32.totalorder %s56, %s57
    %p68 = scmp.eq.s32.totalorder %s22, 0
    %p69 = por %p67, %p68
    %p70 = scmp.ne.s32.totalorder %s56, %s57
    %p71 = scmp.eq.s32.totalorder %s23, 1
    %p72 = por %p70, %p71
    %p74 = scmp.ne.s32.totalorder %s57, %s73
    %p75 = scmp.eq.s32.totalorder %s23, 0
    %p76 = por %p74, %p75
    %s77 = ssub.s32 %s17, %s24
    %p78 = scmp.eq.s32.totalorder %s77, 0
    %s80 = sadd.s32 %s79, 1
    %s81 = scalar_select %p78, %s79, %s80
    %p84 = pneg %p78
    %p85 = scmp.eq.s32.totalorder %s17, 1
    %p86 = por %p84, %p85
    %p87 = scmp.ne.s32.totalorder %s79, %s82
    %p88 = scmp.eq.s32.totalorder %s17, 0
    %p89 = por %p87, %p88
    %p90 = scmp.ne.s32.totalorder %s79, %s82
    %p91 = scmp.eq.s32.totalorder %s22, 1
    %p92 = por %p90, %p91
    %p93 = scmp.ne.s32.totalorder %s82, %s83
    %p94 = scmp.eq.s32.totalorder %s22, 0
    %p95 = por %p93, %p94
    %p96 = scmp.ne.s32.totalorder %s82, %s83
    %p97 = scmp.eq.s32.totalorder %s23, 1
    %p98 = por %p96, %p97
    %p100 = scmp.ne.s32.totalorder %s83, %s99
    %p101 = scmp.eq.s32.totalorder %s23, 0
    %p102 = por %p100, %p101
    %s103 = ssub.s32 %s17, %s24
    %p104 = scmp.eq.s32.totalorder %s103, 0
    %s106 = sadd.s32 %s105, 1
    %s107 = scalar_select %p104, %s105, %s106
    %p110 = pneg %p104
    %p111 = scmp.eq.s32.totalorder %s17, 1
    %p112 = por %p110, %p111
    %p113 = scmp.ne.s32.totalorder %s105, %s108
    %p114 = scmp.eq.s32.totalorder %s17, 0
    %p115 = por %p113, %p114
    %p116 = scmp.ne.s32.totalorder %s105, %s108
    %p117 = scmp.eq.s32.totalorder %s22, 1
    %p118 = por %p116, %p117
    %p119 = scmp.ne.s32.totalorder %s108, %s109
    %p120 = scmp.eq.s32.totalorder %s22, 0
    %p121 = por %p119, %p120
    %p122 = scmp.ne.s32.totalorder %s108, %s109
    %p123 = scmp.eq.s32.totalorder %s23, 1
    %p124 = por %p122, %p123
    %p126 = scmp.ne.s32.totalorder %s109, %s125
    %p127 = scmp.eq.s32.totalorder %s23, 0
    %p128 = por %p126, %p127
    %s130 = sadd.s32 %s129, 1
    %p133 = scmp.eq.s32.totalorder %s17, 1
    %p134 = scmp.ne.s32.totalorder %s129, %s131
    %p135 = scmp.eq.s32.totalorder %s17, 0
    %p136 = por %p134, %p135
    %p137 = scmp.ne.s32.totalorder %s129, %s131
    %p138 = scmp.eq.s32.totalorder %s22, 1
    %p139 = por %p137, %p138
    %p140 = scmp.ne.s32.totalorder %s131, %s132
    %p141 = scmp.eq.s32.totalorder %s22, 0
    %p142 = por %p140, %p141
    %p143 = scmp.ne.s32.totalorder %s131, %s132
    %p144 = scmp.eq.s32.totalorder %s23, 1
    %p145 = por %p143, %p144
    %p147 = scmp.ne.s32.totalorder %s132, %s146
    %p148 = scmp.eq.s32.totalorder %s23, 0
    %p149 = por %p147, %p148
    %s151 = sadd.s32 %s150, 1
    %p154 = scmp.eq.s32.totalorder %s17, 1
    %p155 = scmp.ne.s32.totalorder %s150, %s152
    %p156 = scmp.eq.s32.totalorder %s17, 0
    %p157 = por %p155, %p156
    %p158 = scmp.ne.s32.totalorder %s150, %s152
    %p159 = scmp.eq.s32.totalorder %s22, 1
    %p160 = por %p158, %p159
    %p161 = scmp.ne.s32.totalorder %s152, %s153
    %p162 = scmp.eq.s32.totalorder %s22, 0
    %p163 = por %p161, %p162
    %p164 = scmp.ne.s32.totalorder %s152, %s153
    %p165 = scmp.eq.s32.totalorder %s23, 1
    %p166 = por %p164, %p165
    %p168 = scmp.ne.s32.totalorder %s153, %s167
    %p169 = scmp.eq.s32.totalorder %s23, 0
    %p170 = por %p168, %p169
    %s172 = sadd.s32 %s171, 1
    %p175 = scmp.eq.s32.totalorder %s17, 1
    %p176 = scmp.ne.s32.totalorder %s171, %s173
    %p177 = scmp.eq.s32.totalorder %s17, 0
    %p178 = por %p176, %p177
    %p179 = scmp.ne.s32.totalorder %s171, %s173
    %p180 = scmp.eq.s32.totalorder %s22, 1
    %p181 = por %p179, %p180
    %p182 = scmp.ne.s32.totalorder %s173, %s174
    %p183 = scmp.eq.s32.totalorder %s22, 0
    %p184 = por %p182, %p183
    %p185 = scmp.ne.s32.totalorder %s173, %s174
    %p186 = scmp.eq.s32.totalorder %s23, 1
    %p187 = por %p185, %p186
    %p189 = scmp.ne.s32.totalorder %s174, %s188
    %p190 = scmp.eq.s32.totalorder %s23, 0
    %p191 = por %p189, %p190
    %s193 = sadd.s32 %s192, 1
    %p196 = scmp.eq.s32.totalorder %s17, 1
    %p197 = scmp.ne.s32.totalorder %s192, %s194
    %p198 = scmp.eq.s32.totalorder %s17, 0
    %p199 = por %p197, %p198
    %p200 = scmp.ne.s32.totalorder %s192, %s194
    %p201 = scmp.eq.s32.totalorder %s22, 1
    %p202 = por %p200, %p201
    %p203 = scmp.ne.s32.totalorder %s194, %s195
    %p204 = scmp.eq.s32.totalorder %s22, 0
    %p205 = por %p203, %p204
    %p206 = scmp.ne.s32.totalorder %s194, %s195
    %p207 = scmp.eq.s32.totalorder %s23, 1
    %p208 = por %p206, %p207
    %p210 = scmp.ne.s32.totalorder %s195, %s209
    %p211 = scmp.eq.s32.totalorder %s23, 0
    %p212 = por %p210, %p211
    %s214 = sadd.s32 %s213, 1
    %p217 = scmp.eq.s32.totalorder %s17, 1
    %p218 = scmp.ne.s32.totalorder %s213, %s215
    %p219 = scmp.eq.s32.totalorder %s17, 0
    %p220 = por %p218, %p219
    %p221 = scmp.ne.s32.totalorder %s213, %s215
    %p222 = scmp.eq.s32.totalorder %s22, 1
    %p223 = por %p221, %p222
    %p224 = scmp.ne.s32.totalorder %s215, %s216
    %p225 = scmp.eq.s32.totalorder %s22, 0
    %p226 = por %p224, %p225
    %p227 = scmp.ne.s32.totalorder %s215, %s216
    %p228 = scmp.eq.s32.totalorder %s23, 1
    %p229 = por %p227, %p228
    %p231 = scmp.ne.s32.totalorder %s216, %s230
    %p232 = scmp.eq.s32.totalorder %s23, 0
    %p233 = por %p231, %p232
    %s235 = sadd.s32 %s234, 1
    %p238 = scmp.eq.s32.totalorder %s17, 1
    %p239 = scmp.ne.s32.totalorder %s234, %s236
    %p240 = scmp.eq.s32.totalorder %s17, 0
    %p241 = por %p239, %p240
    %p242 = scmp.ne.s32.totalorder %s234, %s236
    %p243 = scmp.eq.s32.totalorder %s22, 1
    %p244 = por %p242, %p243
    %p245 = scmp.ne.s32.totalorder %s236, %s237
    %p246 = scmp.eq.s32.totalorder %s22, 0
    %p247 = por %p245, %p246
    %p248 = scmp.ne.s32.totalorder %s236, %s237
    %p249 = scmp.eq.s32.totalorder %s23, 1
    %p250 = por %p248, %p249
    %p252 = scmp.ne.s32.totalorder %s237, %s251
    %p253 = scmp.eq.s32.totalorder %s23, 0
    %p254 = por %p252, %p253
    %s256 = sadd.s32 %s255, 1
    %p259 = scmp.eq.s32.totalorder %s17, 1
    %p260 = scmp.ne.s32.totalorder %s255, %s257
    %p261 = scmp.eq.s32.totalorder %s17, 0
    %p262 = por %p260, %p261
    %p263 = scmp.ne.s32.totalorder %s255, %s257
    %p264 = scmp.eq.s32.totalorder %s22, 1
    %p265 = por %p263, %p264
    %p266 = scmp.ne.s32.totalorder %s257, %s258
    %p267 = scmp.eq.s32.totalorder %s22, 0
    %p268 = por %p266, %p267
    %p269 = scmp.ne.s32.totalorder %s257, %s258
    %p270 = scmp.eq.s32.totalorder %s23, 1
    %p271 = por %p269, %p270
    %p273 = scmp.ne.s32.totalorder %s258, %s272
    %p274 = scmp.eq.s32.totalorder %s23, 0
    %p275 = por %p273, %p274
    %s276 = ssub.s32 %s17, %s24
    %p277 = scmp.eq.s32.totalorder %s276, 0
    %s279 = sadd.s32 %s278, 1
    %s280 = scalar_select %p277, %s278, %s279
    %p283 = pneg %p277
    %p284 = scmp.eq.s32.totalorder %s17, 1
    %p285 = por %p283, %p284
    %p286 = scmp.ne.s32.totalorder %s278, %s281
    %p287 = scmp.eq.s32.totalorder %s17, 0
    %p288 = por %p286, %p287
    %p289 = scmp.ne.s32.totalorder %s278, %s281
    %p290 = scmp.eq.s32.totalorder %s22, 1
    %p291 = por %p289, %p290
    %p292 = scmp.ne.s32.totalorder %s281, %s282
    %p293 = scmp.eq.s32.totalorder %s22, 0
    %p294 = por %p292, %p293
    %p295 = scmp.ne.s32.totalorder %s281, %s282
    %p296 = scmp.eq.s32.totalorder %s23, 1
    %p297 = por %p295, %p296
    %p299 = scmp.ne.s32.totalorder %s282, %s298
    %p300 = scmp.eq.s32.totalorder %s23, 0
    %p301 = por %p299, %p300
    %p302 = scmp.le.s32.totalorder 1, %s17
    %p303 = scmp.lt.s32.totalorder %s17, 3
    %p304 = pnand %p302, %p303
    %p305 = pneg %p304
    // Predicated region
    $region9: #{level_step.3} parent=5 // pred_check
      _
    $region10: #{level_step.3} parent=5 // pred_check_branch
      %307 = sbr.rel (%p304) target = $region12
    $region11: #{level_step.3} parent=5 // pred_region
      %s308 = ssub.s32 %s17, 1
      // Predicated region
      $region13: #{level_step.3} parent=11 // pred_check
        %p309 = pneg %p142
      $region14: #{level_step.3} parent=11 // pred_check_branch
        %311 = sbr.rel (%p309) target = $region16
      $region15: #{level_step.3} parent=11 // pred_region
        _
      $region16: #{level_step.3} parent=11 // pred_fallthru
        _
      // Predicated region
      $region17: #{level_step.3} parent=11 // pred_check
        %p312 = pneg %p163
      $region18: #{level_step.3} parent=11 // pred_check_branch
        %314 = sbr.rel (%p312) target = $region20
      $region19: #{level_step.3} parent=11 // pred_region
        _
      $region20: #{level_step.3} parent=11 // pred_fallthru
        _
      // Predicated region
      $region21: #{level_step.3} parent=11 // pred_check
        %p315 = pneg %p184
      $region22: #{level_step.3} parent=11 // pred_check_branch
        %317 = sbr.rel (%p315) target = $region24
      $region23: #{level_step.3} parent=11 // pred_region
        _
      $region24: #{level_step.3} parent=11 // pred_fallthru
        _
      // Predicated region
      $region25: #{level_step.3} parent=11 // pred_check
        %p318 = pneg %p205
      $region26: #{level_step.3} parent=11 // pred_check_branch
        %320 = sbr.rel (%p318) target = $region28
      $region27: #{level_step.3} parent=11 // pred_region
        _
      $region28: #{level_step.3} parent=11 // pred_fallthru
        _
      // Predicated region
      $region29: #{level_step.3} parent=11 // pred_check
        %p321 = pneg %p226
      $region30: #{level_step.3} parent=11 // pred_check_branch
        %323 = sbr.rel (%p321) target = $region32
      $region31: #{level_step.3} parent=11 // pred_region
        _
      $region32: #{level_step.3} parent=11 // pred_fallthru
        _
      // Predicated region
      $region33: #{level_step.3} parent=11 // pred_check
        %p324 = pneg %p247
      $region34: #{level_step.3} parent=11 // pred_check_branch
        %326 = sbr.rel (%p324) target = $region36
      $region35: #{level_step.3} parent=11 // pred_region
        _
      $region36: #{level_step.3} parent=11 // pred_fallthru
        _
      // Predicated region
      $region37: #{level_step.3} parent=11 // pred_check
        %p327 = pneg %p268
      $region38: #{level_step.3} parent=11 // pred_check_branch
        %329 = sbr.rel (%p327) target = $region40
      $region39: #{level_step.3} parent=11 // pred_region
        _
      $region40: #{level_step.3} parent=11 // pred_fallthru
        _
    $region12: #{level_step.3} parent=5 // pred_fallthru
      _
    %p330 = scmp.lt.s32.totalorder %s17, 2
    // Predicated region
    $region41: #{level_step.3} parent=5 // pred_check
      %p331 = pneg %p330
    $region42: #{level_step.3} parent=5 // pred_check_branch
      %333 = sbr.rel (%p331) target = $region44
    $region43: #{level_step.3} parent=5 // pred_region
      // Predicated region
      $region45: #{level_step.3} parent=43 // pred_check
        %p334 = pneg %p37
      $region46: #{level_step.3} parent=43 // pred_check_branch
        %336 = sbr.rel (%p334) target = $region48
      $region47: #{level_step.3} parent=43 // pred_region
        %p337 = scmp.lt.s32.totalorder %s17, 1
        %s338 = scalar_select %p337, %s17, 1
        %s339 = smul.addr %s338, 4
        %s340 = smul.addr %s339, 8
        %s341 = scalar_lea.vmem %s0, %s340
      $region48: #{level_step.3} parent=43 // pred_fallthru
        _
      // Predicated region
      $region49: #{level_step.3} parent=43 // pred_check
        %p342 = pneg %p63
      $region50: #{level_step.3} parent=43 // pred_check_branch
        %344 = sbr.rel (%p342) target = $region52
      $region51: #{level_step.3} parent=43 // pred_region
        %p345 = scmp.lt.s32.totalorder %s17, 1
        %s346 = scalar_select %p345, %s17, 1
        %s347 = smul.addr %s346, 60
        %s348 = smul.addr %s347, 4
        %s349 = scalar_lea.vmem %s1, %s348
      $region52: #{level_step.3} parent=43 // pred_fallthru
        _
      // Predicated region
      $region53: #{level_step.3} parent=43 // pred_check
        %p350 = pneg %p89
      $region54: #{level_step.3} parent=43 // pred_check_branch
        %352 = sbr.rel (%p350) target = $region56
      $region55: #{level_step.3} parent=43 // pred_region
        %p353 = scmp.lt.s32.totalorder %s17, 1
        %s354 = scalar_select %p353, %s17, 1
        %s355 = smul.addr %s354, 2
        %s356 = smul.addr %s355, 4
        %s357 = scalar_lea.vmem %s2, %s356
      $region56: #{level_step.3} parent=43 // pred_fallthru
        _
      // Predicated region
      $region57: #{level_step.3} parent=43 // pred_check
        %p358 = pneg %p115
      $region58: #{level_step.3} parent=43 // pred_check_branch
        %360 = sbr.rel (%p358) target = $region60
      $region59: #{level_step.3} parent=43 // pred_region
        %p361 = scmp.lt.s32.totalorder %s17, 1
        %s362 = scalar_select %p361, %s17, 1
        %s363 = smul.addr %s362, 2
        %s364 = scalar_lea.vmem %s3, %s363
      $region60: #{level_step.3} parent=43 // pred_fallthru
        _
    $region44: #{level_step.3} parent=5 // pred_fallthru
      _
    %p365 = scmp.le.s32.totalorder 1, %s17
    %p366 = scmp.lt.s32.totalorder %s17, 3
    %p367 = pnand %p365, %p366
    %p368 = pneg %p367
    // Predicated region
    $region61: #{level_step.3} parent=5 // pred_check
      _
    $region62: #{level_step.3} parent=5 // pred_check_branch
      %370 = sbr.rel (%p367) target = $region64
    $region63: #{level_step.3} parent=5 // pred_region
      %s371 = ssub.s32 %s17, 1
      %p372 = scmp.lt.s32.totalorder %s22, 1
      %s373 = scalar_select %p372, %s22, 1
      %s374 = smul.addr %s373, 4
      %s375 = smul.addr %s374, 8
      %s376 = scalar_lea.vmem %s0, %s375
      %p377 = pneg %p43
      %p378 = pneg %p40
      %p379 = scmp.lt.s32.totalorder %s22, 1
      %s380 = scalar_select %p379, %s22, 1
      %s381 = smul.addr %s380, 60
      %s382 = smul.addr %s381, 4
      %s383 = scalar_lea.vmem %s1, %s382
      %p384 = pneg %p69
      %p385 = pneg %p66
      %p386 = scmp.lt.s32.totalorder %s22, 1
      %s387 = scalar_select %p386, %s22, 1
      %s388 = smul.addr %s387, 2
      %s389 = smul.addr %s388, 4
      %s390 = scalar_lea.vmem %s2, %s389
      %p391 = pneg %p95
      %p392 = pneg %p92
      %p393 = scmp.lt.s32.totalorder %s22, 1
      %s394 = scalar_select %p393, %s22, 1
      %s395 = smul.addr %s394, 2
      %s396 = scalar_lea.vmem %s3, %s395
      %p397 = pneg %p121
      %p398 = pneg %p118
      %p399 = pneg %p142
      %p400 = pneg %p139
      %p401 = pneg %p163
      %p402 = pneg %p160
      %p403 = pneg %p184
      %p404 = pneg %p181
      %p405 = pneg %p205
      %p406 = pneg %p202
      %p407 = pneg %p226
      %p408 = pneg %p223
      %p409 = pneg %p247
      %p410 = pneg %p244
      %p411 = pneg %p268
      %p412 = pneg %p265
      %p413 = pneg %p294
      %p414 = pneg %p291
      %p415 = scmp.lt.s32.totalorder %s22, 1
      %s416 = scalar_select %p415, %s22, 1
      %s417 = smul.addr %s416, 4
      %s418 = smul.addr %s417, 8
      %s419 = scalar_lea.vmem %s11, %s418
      %p420 = scmp.lt.s32.totalorder %s22, 1
      %s421 = scalar_select %p420, %s22, 1
      %s422 = smul.addr %s421, 4
      %s423 = smul.addr %s422, 8
      %s424 = scalar_lea.vmem %s0, %s423
      %p425 = scmp.lt.s32.totalorder %s22, 1
      %s426 = scalar_select %p425, %s22, 1
      %s427 = smul.addr %s426, 60
      %s428 = smul.addr %s427, 4
      %s429 = scalar_lea.vmem %s1, %s428
      %p430 = scmp.lt.s32.totalorder %s22, 1
      %s431 = scalar_select %p430, %s22, 1
      %s432 = smul.addr %s431, 2
      %s433 = smul.addr %s432, 4
      %s434 = scalar_lea.vmem %s2, %s433
      %p435 = scmp.lt.s32.totalorder %s22, 1
      %s436 = scalar_select %p435, %s22, 1
      %s437 = smul.addr %s436, 2
      %s438 = scalar_lea.vmem %s3, %s437
      %p439 = scmp.lt.s32.totalorder %s22, 1
      %s440 = scalar_select %p439, %s22, 1
      %s441 = smul.addr %s440, 4
      %s442 = smul.addr %s441, 8
      %s443 = scalar_lea.vmem %s11, %s442
      %v445 = vld [vmem:[%s429] sm:$0xff]
      %v446 = vld [vmem:[%s429 + $0x8] sm:$0xff]
      %v447 = vld [vmem:[%s429 + $0x10] sm:$0xff]
      %v448 = vld [vmem:[%s429 + $0x18] sm:$0xff]
      %v449 = vld [vmem:[%s429 + $0x20] sm:$0xff]
      %v450 = vld [vmem:[%s429 + $0x28] sm:$0xff]
      %v451 = vld [vmem:[%s429 + $0x30] sm:$0xff]
      %v452 = vld [vmem:[%s429 + $0x38] sm:$0xff]
      %v453 = vld [vmem:[%s429 + $0x40] sm:$0xff]
      %v454 = vld [vmem:[%s429 + $0x48] sm:$0xff]
      %v455 = vld [vmem:[%s429 + $0x50] sm:$0xff]
      %v456 = vld [vmem:[%s429 + $0x58] sm:$0xff]
      %v457 = vld [vmem:[%s429 + $0x60] sm:$0xff]
      %v458 = vld [vmem:[%s429 + $0x68] sm:$0xff]
      %v459 = vld [vmem:[%s429 + $0x70] sm:$0xff]
      %v460 = vld [vmem:[%s429 + $0x78] sm:$0xff]
      %v461 = vld [vmem:[%s429 + $0x80] sm:$0xff]
      %v462 = vld [vmem:[%s429 + $0x88] sm:$0xff]
      %v463 = vld [vmem:[%s429 + $0x90] sm:$0xff]
      %v464 = vld [vmem:[%s429 + $0x98] sm:$0xff]
      %v465 = vld [vmem:[%s429 + $0xa0] sm:$0xff]
      %v466 = vld [vmem:[%s429 + $0xa8] sm:$0xff]
      %v467 = vld [vmem:[%s429 + $0xb0] sm:$0xff]
      %v468 = vld [vmem:[%s429 + $0xb8] sm:$0xff]
      %v469 = vld [vmem:[%s429 + $0xc0] sm:$0xff]
      %v470 = vld [vmem:[%s429 + $0xc8] sm:$0xff]
      %v471 = vld [vmem:[%s429 + $0xd0] sm:$0xff]
      %v472 = vld [vmem:[%s429 + $0xd8] sm:$0xff]
      %v473 = vld [vmem:[%s429 + $0xe0] sm:$0xff]
      %v474 = vld [vmem:[%s429 + $0xe8] sm:$0xff]
      %v475 = vld [vmem:[%s4] sm:$0xff]
      %v476 = vld [vmem:[%s4 + $0x8] sm:$0xff]
      %v477 = vld [vmem:[%s4 + $0x10] sm:$0xff]
      %v478 = vld [vmem:[%s4 + $0x18] sm:$0xff]
      %v479 = vld [vmem:[%s5] sm:$0xff]
      %v480 = vld [vmem:[%s5 + $0x8] sm:$0xff]
      %v481 = vld [vmem:[%s5 + $0x10] sm:$0xff]
      %v482 = vld [vmem:[%s5 + $0x18] sm:$0xff]
      %484 = vset.pattern.permute.xlu0 0
      %485 = vperm.xlu0 %484, %v479
      %v486 = vpop.permute.xlu0 %485
      %489 = vset.pattern.permute.xlu0 0
      %490 = vperm.xlu0 %489, %v480
      %v491 = vpop.permute.xlu0 %490
      %494 = vset.pattern.permute.xlu0 0
      %495 = vperm.xlu0 %494, %v481
      %v496 = vpop.permute.xlu0 %495
      %499 = vset.pattern.permute.xlu0 0
      %500 = vperm.xlu0 %499, %v482
      %v501 = vpop.permute.xlu0 %500
      %v507 = vunpack.c.l.b16 %v475
      %v508 = vunpack.c.h.b16 %v475
      %v509 = vunpack.c.l.b16 %v476
      %v510 = vunpack.c.h.b16 %v476
      %v511 = vunpack.c.l.b16 %v477
      %v512 = vunpack.c.h.b16 %v477
      %v513 = vunpack.c.l.b16 %v478
      %v514 = vunpack.c.h.b16 %v478
      %v515 = vpack.c.b16 %v509, %v507
      %v516 = vpack.c.b16 %v510, %v508
      %v517 = vpack.c.b16 %v513, %v511
      %v518 = vpack.c.b16 %v514, %v512
      %v551 = vunpack.c.l.b16 %v445
      %v552 = vunpack.c.h.b16 %v445
      %v553 = vunpack.c.l.b16 %v446
      %v554 = vunpack.c.h.b16 %v446
      %v555 = vunpack.c.l.b16 %v447
      %v556 = vunpack.c.h.b16 %v447
      %v557 = vunpack.c.l.b16 %v448
      %v558 = vunpack.c.h.b16 %v448
      %v559 = vunpack.c.l.b16 %v449
      %v560 = vunpack.c.h.b16 %v449
      %v561 = vunpack.c.l.b16 %v450
      %v562 = vunpack.c.h.b16 %v450
      %v563 = vunpack.c.l.b16 %v451
      %v564 = vunpack.c.h.b16 %v451
      %v565 = vunpack.c.l.b16 %v452
      %v566 = vunpack.c.h.b16 %v452
      %v567 = vunpack.c.l.b16 %v453
      %v568 = vunpack.c.h.b16 %v453
      %v569 = vunpack.c.l.b16 %v454
      %v570 = vunpack.c.h.b16 %v454
      %v571 = vunpack.c.l.b16 %v455
      %v572 = vunpack.c.h.b16 %v455
      %v573 = vunpack.c.l.b16 %v456
      %v574 = vunpack.c.h.b16 %v456
      %v575 = vunpack.c.l.b16 %v457
      %v576 = vunpack.c.h.b16 %v457
      %v577 = vunpack.c.l.b16 %v458
      %v578 = vunpack.c.h.b16 %v458
      %v579 = vunpack.c.l.b16 %v459
      %v580 = vunpack.c.h.b16 %v459
      %v581 = vunpack.c.l.b16 %v460
      %v582 = vunpack.c.h.b16 %v460
      %v583 = vunpack.c.l.b16 %v461
      %v584 = vunpack.c.h.b16 %v461
      %v585 = vunpack.c.l.b16 %v462
      %v586 = vunpack.c.h.b16 %v462
      %v587 = vunpack.c.l.b16 %v463
      %v588 = vunpack.c.h.b16 %v463
      %v589 = vunpack.c.l.b16 %v464
      %v590 = vunpack.c.h.b16 %v464
      %v591 = vunpack.c.l.b16 %v465
      %v592 = vunpack.c.h.b16 %v465
      %v593 = vunpack.c.l.b16 %v466
      %v594 = vunpack.c.h.b16 %v466
      %v595 = vunpack.c.l.b16 %v467
      %v596 = vunpack.c.h.b16 %v467
      %v597 = vunpack.c.l.b16 %v468
      %v598 = vunpack.c.h.b16 %v468
      %v599 = vunpack.c.l.b16 %v469
      %v600 = vunpack.c.h.b16 %v469
      %v601 = vunpack.c.l.b16 %v470
      %v602 = vunpack.c.h.b16 %v470
      %v603 = vunpack.c.l.b16 %v471
      %v604 = vunpack.c.h.b16 %v471
      %v605 = vunpack.c.l.b16 %v472
      %v606 = vunpack.c.h.b16 %v472
      %v607 = vunpack.c.l.b16 %v473
      %v608 = vunpack.c.h.b16 %v473
      %v609 = vunpack.c.l.b16 %v474
      %v610 = vunpack.c.h.b16 %v474
      %v611 = vpack.c.b16 %v553, %v551
      %v612 = vpack.c.b16 %v554, %v552
      %v613 = vpack.c.b16 %v557, %v555
      %v614 = vpack.c.b16 %v558, %v556
      %v615 = vpack.c.b16 %v561, %v559
      %v616 = vpack.c.b16 %v562, %v560
      %v617 = vpack.c.b16 %v565, %v563
      %v618 = vpack.c.b16 %v566, %v564
      %v619 = vpack.c.b16 %v569, %v567
      %v620 = vpack.c.b16 %v570, %v568
      %v621 = vpack.c.b16 %v573, %v571
      %v622 = vpack.c.b16 %v574, %v572
      %v623 = vpack.c.b16 %v577, %v575
      %v624 = vpack.c.b16 %v578, %v576
      %v625 = vpack.c.b16 %v581, %v579
      %v626 = vpack.c.b16 %v582, %v580
      %v627 = vpack.c.b16 %v585, %v583
      %v628 = vpack.c.b16 %v586, %v584
      %v629 = vpack.c.b16 %v589, %v587
      %v630 = vpack.c.b16 %v590, %v588
      %v631 = vpack.c.b16 %v593, %v591
      %v632 = vpack.c.b16 %v594, %v592
      %v633 = vpack.c.b16 %v597, %v595
      %v634 = vpack.c.b16 %v598, %v596
      %v635 = vpack.c.b16 %v601, %v599
      %v636 = vpack.c.b16 %v602, %v600
      %v637 = vpack.c.b16 %v605, %v603
      %v638 = vpack.c.b16 %v606, %v604
      %v639 = vpack.c.b16 %v609, %v607
      %v640 = vpack.c.b16 %v610, %v608
      %vm671 = vcmask 916480
      %v673 = vsel %vm671, %v516, 0
      %v676 = vsel %vm671, %v518, 0
      %678 = vmatprep.subr.bf16.mxu0 %v612
      %679 = vmatpush1.bf16.msra.mxu0 %v611
      %680 = vmatprep.subr.bf16.mxu0 %v614
      %681 = vmatpush1.bf16.msra.mxu0 %v613
      %682 = vmatprep.subr.bf16.mxu0 %v616
      %683 = vmatpush1.bf16.msra.mxu0 %v615
      %684 = vmatprep.subr.bf16.mxu0 %v618
      %685 = vmatpush1.bf16.msra.mxu0 %v617
      %686 = vmatprep.subr.bf16.mxu0 %v620
      %687 = vmatpush1.bf16.msra.mxu0 %v619
      %688 = vmatprep.subr.bf16.mxu0 %v622
      %689 = vmatpush1.bf16.msra.mxu0 %v621
      %690 = vmatprep.subr.bf16.mxu0 %v624
      %691 = vmatpush1.bf16.msra.mxu0 %v623
      %692 = vmatprep.subr.bf16.mxu0 %v626
      %693 = vmatpush1.bf16.msra.mxu0 %v625
      %694 = vmatprep.subr.bf16.mxu0 %v628
      %695 = vmatpush1.bf16.msra.mxu0 %v627
      %696 = vmatprep.subr.bf16.mxu0 %v630
      %697 = vmatpush1.bf16.msra.mxu0 %v629
      %698 = vmatprep.subr.bf16.mxu0 %v632
      %699 = vmatpush1.bf16.msra.mxu0 %v631
      %700 = vmatprep.subr.bf16.mxu0 %v634
      %701 = vmatpush1.bf16.msra.mxu0 %v633
      %702 = vmatprep.subr.bf16.mxu0 %v636
      %703 = vmatpush1.bf16.msra.mxu0 %v635
      %704 = vmatprep.subr.bf16.mxu0 %v638
      %705 = vmatpush1.bf16.msra.mxu0 %v637
      %706 = vmatprep.subr.bf16.mxu0 %v640
      %707 = vmatpush1.bf16.msra.mxu0 %v639
      %708 = vmatprep.subr.bf16.mxu0 0
      %709 = vmatpush1.bf16.msra.mxu0 0
      %710 = vmatprep.mubr.bf16.mxu0 %v673
      %711 = vmatmul.mubr.bf16.gmra.mrb[0].mxu0 %v515
      %v712 = vpop.f32.mrb[0].mxu0
      %v713 = vadd.f32 %v486, %v712
      %v714 = vpop.f32.mrb[0].mxu0
      %v715 = vadd.f32 %v486, %v714
      %v716 = vpop.f32.mrb[0].mxu0
      %v717 = vadd.f32 %v491, %v716
      %v718 = vpop.f32.mrb[0].mxu0
      %v719 = vadd.f32 %v491, %v718
      %720 = vmatprep.mubr.bf16.mxu0 %v676
      %721 = vmatmul.mubr.bf16.gmra.mrb[0].mxu0 %v517
      %v722 = vpop.f32.mrb[0].mxu0
      %v723 = vadd.f32 %v496, %v722
      %v724 = vpop.f32.mrb[0].mxu0
      %v725 = vadd.f32 %v496, %v724
      %v726 = vpop.f32.mrb[0].mxu0
      %v727 = vadd.f32 %v501, %v726
      %v728 = vpop.f32.mrb[0].mxu0
      %v729 = vadd.f32 %v501, %v728
      %730 = vdwg.mxu0
      %v731 = vadd.f32 %v713, %v715
      %v732 = vadd.f32 %v731, %v717
      %v733 = vadd.f32 %v732, %v719
      %v734 = vadd.f32 %v733, %v723
      %v735 = vadd.f32 %v734, %v725
      %v736 = vadd.f32 %v735, %v727
      %v737 = vadd.f32 %v736, %v729
      %738 = vadd.xlane.f32.xlu0 %v737
      %v739 = vpop.xlane.xlu0 %738
      %v740 = vrot.slane %v739, 4
      %v741 = vadd.f32 %v739, %v740
      %v742 = vrot.slane %v741, 2
      %v743 = vadd.f32 %v741, %v742
      %v744 = vrot.slane %v743, 1
      %v745 = vadd.f32 %v743, %v744
      %s746 = vtos %v745
      %v747 = vmul.f32 %v713, %v713
      %v748 = vmul.f32 %v715, %v715
      %v749 = vmul.f32 %v717, %v717
      %v750 = vmul.f32 %v719, %v719
      %v751 = vmul.f32 %v723, %v723
      %v752 = vmul.f32 %v725, %v725
      %v753 = vmul.f32 %v727, %v727
      %v754 = vmul.f32 %v729, %v729
      %v755 = vadd.f32 %v747, %v748
      %v756 = vadd.f32 %v755, %v749
      %v757 = vadd.f32 %v756, %v750
      %v758 = vadd.f32 %v757, %v751
      %v759 = vadd.f32 %v758, %v752
      %v760 = vadd.f32 %v759, %v753
      %v761 = vadd.f32 %v760, %v754
      %762 = vadd.xlane.f32.xlu0 %v761
      %v763 = vpop.xlane.xlu0 %762
      %v764 = vrot.slane %v763, 4
      %v765 = vadd.f32 %v763, %v764
      %v766 = vrot.slane %v765, 2
      %v767 = vadd.f32 %v765, %v766
      %v768 = vrot.slane %v767, 1
      %v769 = vadd.f32 %v767, %v768
      %s770 = vtos %v769
      %v771 = vrcp.pop 8192.0
      %s772 = vtos %v771
      %s773 = smul.f32 %s746, %s772
      %v774 = vrcp.pop 8192.0
      %s775 = vtos %v774
      %s776 = smul.f32 %s770, %s775
      %s777 = smul.f32 %s773, %s773
      %s778 = ssub.f32 %s776, %s777
      %v779 = vstv %s773
      %v780 = vsub.f32 %v713, %v779
      %v781 = vsub.f32 %v715, %v779
      %v782 = vsub.f32 %v717, %v779
      %v783 = vsub.f32 %v719, %v779
      %v784 = vsub.f32 %v723, %v779
      %v785 = vsub.f32 %v725, %v779
      %v786 = vsub.f32 %v727, %v779
      %v787 = vsub.f32 %v729, %v779
      %s788 = sadd.f32 %s778, 1e-05
      %v789 = vstv %s788
      %v790 = vrsqrt.pop %v789
      %s791 = vtos %v790
      %v792 = vstv %s791
      %v793 = vmul.f32 %v780, %v792
      %v794 = vmul.f32 %v781, %v792
      %v795 = vmul.f32 %v782, %v792
      %v796 = vmul.f32 %v783, %v792
      %v797 = vmul.f32 %v784, %v792
      %v798 = vmul.f32 %v785, %v792
      %v799 = vmul.f32 %v786, %v792
      %v800 = vmul.f32 %v787, %v792
      %v801 = vld [vmem:[%s6] sm:$0xff]
      %v802 = vld [vmem:[%s6 + $0x8] sm:$0xff]
      %v803 = vld [vmem:[%s6 + $0x10] sm:$0xff]
      %v804 = vld [vmem:[%s6 + $0x18] sm:$0xff]
      %806 = vset.pattern.permute.xlu0 0
      %807 = vperm.xlu0 %806, %v801
      %v808 = vpop.permute.xlu0 %807
      %811 = vset.pattern.permute.xlu0 0
      %812 = vperm.xlu0 %811, %v802
      %v813 = vpop.permute.xlu0 %812
      %816 = vset.pattern.permute.xlu0 0
      %817 = vperm.xlu0 %816, %v803
      %v818 = vpop.permute.xlu0 %817
      %821 = vset.pattern.permute.xlu0 0
      %822 = vperm.xlu0 %821, %v804
      %v823 = vpop.permute.xlu0 %822
      %v825 = vmul.f32 %v793, %v808
      %v826 = vmul.f32 %v794, %v808
      %v827 = vmul.f32 %v795, %v813
      %v828 = vmul.f32 %v796, %v813
      %v829 = vmul.f32 %v797, %v818
      %v830 = vmul.f32 %v798, %v818
      %v831 = vmul.f32 %v799, %v823
      %v832 = vmul.f32 %v800, %v823
      %v833 = vld [vmem:[%s7] sm:$0xff]
      %v834 = vld [vmem:[%s7 + $0x8] sm:$0xff]
      %v835 = vld [vmem:[%s7 + $0x10] sm:$0xff]
      %v836 = vld [vmem:[%s7 + $0x18] sm:$0xff]
      %838 = vset.pattern.permute.xlu0 0
      %839 = vperm.xlu0 %838, %v833
      %v840 = vpop.permute.xlu0 %839
      %843 = vset.pattern.permute.xlu0 0
      %844 = vperm.xlu0 %843, %v834
      %v845 = vpop.permute.xlu0 %844
      %848 = vset.pattern.permute.xlu0 0
      %849 = vperm.xlu0 %848, %v835
      %v850 = vpop.permute.xlu0 %849
      %853 = vset.pattern.permute.xlu0 0
      %854 = vperm.xlu0 %853, %v836
      %v855 = vpop.permute.xlu0 %854
      %v857 = vadd.f32 %v825, %v840
      %v858 = vadd.f32 %v826, %v840
      %v859 = vadd.f32 %v827, %v845
      %v860 = vadd.f32 %v828, %v845
      %v861 = vadd.f32 %v829, %v850
      %v862 = vadd.f32 %v830, %v850
      %v863 = vadd.f32 %v831, %v855
      %v864 = vadd.f32 %v832, %v855
      %vm865 = vcmp.gt.f32.partialorder %v857, 0.0
      %vm866 = vcmp.gt.f32.partialorder %v858, 0.0
      %vm867 = vcmp.gt.f32.partialorder %v859, 0.0
      %vm868 = vcmp.gt.f32.partialorder %v860, 0.0
      %vm869 = vcmp.gt.f32.partialorder %v861, 0.0
      %vm870 = vcmp.gt.f32.partialorder %v862, 0.0
      %vm871 = vcmp.gt.f32.partialorder %v863, 0.0
      %vm872 = vcmp.gt.f32.partialorder %v864, 0.0
      %v873 = vmul.f32 %v857, 0.01
      %v874 = vmul.f32 %v858, 0.01
      %v875 = vmul.f32 %v859, 0.01
      %v876 = vmul.f32 %v860, 0.01
      %v877 = vmul.f32 %v861, 0.01
      %v878 = vmul.f32 %v862, 0.01
      %v879 = vmul.f32 %v863, 0.01
      %v880 = vmul.f32 %v864, 0.01
      %v881 = vsel %vm865, %v857, %v873
      %v882 = vsel %vm866, %v858, %v874
      %v883 = vsel %vm867, %v859, %v875
      %v884 = vsel %vm868, %v860, %v876
      %v885 = vsel %vm869, %v861, %v877
      %v886 = vsel %vm870, %v862, %v878
      %v887 = vsel %vm871, %v863, %v879
      %v888 = vsel %vm872, %v864, %v880
      %v889 = vld [vmem:[%s8] sm:$0xff]
      %v890 = vld [vmem:[%s8 + $0x8] sm:$0xf]
      %v891 = vld [vmem:[%s9] sm:$0xff]
      %v892 = vld [vmem:[%s9 + $0x8] sm:$0xf]
      %v893 = vld [vmem:[%s434] sm:$0xff]
      %v895 = vcombine.high %v893, %v893
      %vm896 = vcmask 31744
      %v898 = vsel %vm896, %v891, 0
      %v901 = vsel %vm896, %v892, 0
      %vm903 = vcmask 1043456
      %v904 = vsel %vm903, %v893, 0
      %v906 = vsel %vm903, %v895, 0
      %908 = vmatprep.subr.mxu0 %v906
      %909 = vmatpush1.msra.mxu0 %v904
      %910 = vmatprep.subr.mxu0 0.0
      %911 = vmatpush1.msra.mxu0 0.0
      %912 = vmatprep.subr.mxu0 0.0
      %913 = vmatpush1.msra.mxu0 0.0
      %914 = vmatprep.subr.mxu0 0.0
      %915 = vmatpush1.msra.mxu0 0.0
      %916 = vmatprep.subr.mxu0 0.0
      %917 = vmatpush1.msra.mxu0 0.0
      %918 = vmatprep.subr.mxu0 0.0
      %919 = vmatpush1.msra.mxu0 0.0
      %920 = vmatprep.subr.mxu0 0.0
      %921 = vmatpush1.msra.mxu0 0.0
      %922 = vmatprep.subr.mxu0 0.0
      %923 = vmatpush1.msra.mxu0 0.0
      %924 = vmatprep.subr.mxu0 0.0
      %925 = vmatpush1.msra.mxu0 0.0
      %926 = vmatprep.subr.mxu0 0.0
      %927 = vmatpush1.msra.mxu0 0.0
      %928 = vmatprep.subr.mxu0 0.0
      %929 = vmatpush1.msra.mxu0 0.0
      %930 = vmatprep.subr.mxu0 0.0
      %931 = vmatpush1.msra.mxu0 0.0
      %932 = vmatprep.subr.mxu0 0.0
      %933 = vmatpush1.msra.mxu0 0.0
      %934 = vmatprep.subr.mxu0 0.0
      %935 = vmatpush1.msra.mxu0 0.0
      %936 = vmatprep.subr.mxu0 0.0
      %937 = vmatpush1.msra.mxu0 0.0
      %938 = vmatprep.subr.mxu0 0.0
      %939 = vmatpush1.msra.mxu0 0.0
      %940 = vmatprep.subr.mxu0 0.0
      %941 = vmatpush1.msra.mxu0 0.0
      %942 = vmatprep.subr.mxu0 0.0
      %943 = vmatpush1.msra.mxu0 0.0
      %944 = vmatprep.subr.mxu0 0.0
      %945 = vmatpush1.msra.mxu0 0.0
      %946 = vmatprep.subr.mxu0 0.0
      %947 = vmatpush1.msra.mxu0 0.0
      %948 = vmatprep.subr.mxu0 0.0
      %949 = vmatpush1.msra.mxu0 0.0
      %950 = vmatprep.subr.mxu0 0.0
      %951 = vmatpush1.msra.mxu0 0.0
      %952 = vmatprep.subr.mxu0 0.0
      %953 = vmatpush1.msra.mxu0 0.0
      %954 = vmatprep.subr.mxu0 0.0
      %955 = vmatpush1.msra.mxu0 0.0
      %956 = vmatprep.subr.mxu0 0.0
      %957 = vmatpush1.msra.mxu0 0.0
      %958 = vmatprep.subr.mxu0 0.0
      %959 = vmatpush1.msra.mxu0 0.0
      %960 = vmatprep.subr.mxu0 0.0
      %961 = vmatpush1.msra.mxu0 0.0
      %962 = vmatprep.subr.mxu0 0.0
      %963 = vmatpush1.msra.mxu0 0.0
      %964 = vmatprep.subr.mxu0 0.0
      %965 = vmatpush1.msra.mxu0 0.0
      %966 = vmatprep.subr.mxu0 0.0
      %967 = vmatpush1.msra.mxu0 0.0
      %968 = vmatprep.subr.mxu0 0.0
      %969 = vmatpush1.msra.mxu0 0.0
      %970 = vmatprep.subr.mxu0 0.0
      %971 = vmatpush1.msra.mxu0 0.0
      %972 = vmatprep.mubr.f32.mxu0 0.0
      %973 = vmatmul.mubr.f32.gmra.mrb[0].mxu0 %v898
      %v974 = vpop.f32.mrb[0].mxu0
      %v975 = vadd.f32 0.0, %v974
      %v976 = vpop.f32.mrb[0].mxu0
      %v977 = vadd.f32 0.0, %v976
      %978 = vmatprep.mubr.f32.mxu0 0.0
      %979 = vmatmul.mubr.f32.gmra.mrb[0].mxu0 %v901
      %v980 = vpop.f32.mrb[0].mxu0
      %v981 = vadd.f32 0.0, %v980
      %v982 = vpop.f32.mrb[0].mxu0
      %v983 = vadd.f32 0.0, %v982
      %984 = vdwg.mxu0
      %vm985 = vcmask 261120
      %v987 = vsel %vm985, %v889, 0
      %v990 = vsel %vm985, %v890, 0
      %992 = vmatprep.subr.mxu0 %v882
      %993 = vmatpush1.msra.mxu0 %v881
      %994 = vmatprep.subr.mxu0 %v884
      %995 = vmatpush1.msra.mxu0 %v883
      %996 = vmatprep.subr.mxu0 %v886
      %997 = vmatpush1.msra.mxu0 %v885
      %998 = vmatprep.subr.mxu0 %v888
      %999 = vmatpush1.msra.mxu0 %v887
      %1000 = vmatprep.subr.mxu0 0.0
      %1001 = vmatpush1.msra.mxu0 0.0
      %1002 = vmatprep.subr.mxu0 0.0
      %1003 = vmatpush1.msra.mxu0 0.0
      %1004 = vmatprep.subr.mxu0 0.0
      %1005 = vmatpush1.msra.mxu0 0.0
      %1006 = vmatprep.subr.mxu0 0.0
      %1007 = vmatpush1.msra.mxu0 0.0
      %1008 = vmatprep.subr.mxu0 0.0
      %1009 = vmatpush1.msra.mxu0 0.0
      %1010 = vmatprep.subr.mxu0 0.0
      %1011 = vmatpush1.msra.mxu0 0.0
      %1012 = vmatprep.subr.mxu0 0.0
      %1013 = vmatpush1.msra.mxu0 0.0
      %1014 = vmatprep.subr.mxu0 0.0
      %1015 = vmatpush1.msra.mxu0 0.0
      %1016 = vmatprep.subr.mxu0 0.0
      %1017 = vmatpush1.msra.mxu0 0.0
      %1018 = vmatprep.subr.mxu0 0.0
      %1019 = vmatpush1.msra.mxu0 0.0
      %1020 = vmatprep.subr.mxu0 0.0
      %1021 = vmatpush1.msra.mxu0 0.0
      %1022 = vmatprep.subr.mxu0 0.0
      %1023 = vmatpush1.msra.mxu0 0.0
      %1024 = vmatprep.subr.mxu0 0.0
      %1025 = vmatpush1.msra.mxu0 0.0
      %1026 = vmatprep.subr.mxu0 0.0
      %1027 = vmatpush1.msra.mxu0 0.0
      %1028 = vmatprep.subr.mxu0 0.0
      %1029 = vmatpush1.msra.mxu0 0.0
      %1030 = vmatprep.subr.mxu0 0.0
      %1031 = vmatpush1.msra.mxu0 0.0
      %1032 = vmatprep.subr.mxu0 0.0
      %1033 = vmatpush1.msra.mxu0 0.0
      %1034 = vmatprep.subr.mxu0 0.0
      %1035 = vmatpush1.msra.mxu0 0.0
      %1036 = vmatprep.subr.mxu0 0.0
      %1037 = vmatpush1.msra.mxu0 0.0
      %1038 = vmatprep.subr.mxu0 0.0
      %1039 = vmatpush1.msra.mxu0 0.0
      %1040 = vmatprep.subr.mxu0 0.0
      %1041 = vmatpush1.msra.mxu0 0.0
      %1042 = vmatprep.subr.mxu0 0.0
      %1043 = vmatpush1.msra.mxu0 0.0
      %1044 = vmatprep.subr.mxu0 0.0
      %1045 = vmatpush1.msra.mxu0 0.0
      %1046 = vmatprep.subr.mxu0 0.0
      %1047 = vmatpush1.msra.mxu0 0.0
      %1048 = vmatprep.subr.mxu0 0.0
      %1049 = vmatpush1.msra.mxu0 0.0
      %1050 = vmatprep.subr.mxu0 0.0
      %1051 = vmatpush1.msra.mxu0 0.0
      %1052 = vmatprep.subr.mxu0 0.0
      %1053 = vmatpush1.msra.mxu0 0.0
      %1054 = vmatprep.subr.mxu0 0.0
      %1055 = vmatpush1.msra.mxu0 0.0
      %1056 = vmatprep.mubr.f32.mxu0 0.0
      %1057 = vmatmul.mubr.f32.gmra.mrb[0].mxu0 %v987
      %v1058 = vpop.f32.mrb[0].mxu0
      %v1059 = vadd.f32 %v975, %v1058
      %v1060 = vpop.f32.mrb[0].mxu0
      %v1061 = vadd.f32 %v977, %v1060
      %1062 = vmatprep.mubr.f32.mxu0 0.0
      %1063 = vmatmul.mubr.f32.gmra.mrb[0].mxu0 %v990
      %v1064 = vpop.f32.mrb[0].mxu0
      %v1065 = vadd.f32 %v981, %v1064
      %v1066 = vpop.f32.mrb[0].mxu0
      %v1067 = vadd.f32 %v983, %v1066
      %1068 = vdwg.mxu0
      %v1069 = vld [vmem:[%s10] sm:$0xff]
      %v1070 = vld [vmem:[%s10 + $0x8] sm:$0xf]
      %1072 = vset.pattern.permute.xlu0 0
      %1073 = vperm.xlu0 %1072, %v1069
      %v1074 = vpop.permute.xlu0 %1073
      %1077 = vset.pattern.permute.xlu0 0
      %1078 = vperm.xlu0 %1077, %v1070
      %v1079 = vpop.permute.xlu0 %1078
      %v1081 = vadd.f32 %v1059, %v1074
      %v1082 = vadd.f32 %v1061, %v1074
      %v1083 = vadd.f32 %v1065, %v1079
      %v1084 = vadd.f32 %v1067, %v1079
      %v1085 = vld [vmem:[%s424] sm:$0xff]
      %v1086 = vld [vmem:[%s424 + $0x8] sm:$0xff]
      %v1087 = vld [vmem:[%s424 + $0x10] sm:$0xf]
      %v1088 = vld [vmem:[%s424 + $0x18] sm:$0xf]
      %v1089 = vld [vmem:[%s438] sm:$0x3]
      %v1091 = vlaneseq
      %v1092 = vshrl.u32 %v1091, 7
      %v1093 = vsub.s32 0, %v1092
      %v1094 = vrot.slane %v1089, %v1093
      %v1095 = vlaneseq
      %v1096 = vshrl.u32 %v1095, 7
      %v1097 = vsub.s32 1, %v1096
      %v1098 = vrot.slane %v1089, %v1097
      %v1101 = vmul.f32 %v1081, %v1094
      %v1102 = vmul.f32 %v1082, %v1098
      %v1103 = vmul.f32 %v1083, %v1094
      %v1104 = vmul.f32 %v1084, %v1098
      %v1105 = vadd.f32 %v1085, %v1101
      %v1106 = vadd.f32 %v1086, %v1102
      %v1107 = vadd.f32 %v1087, %v1103
      %v1108 = vadd.f32 %v1088, %v1104
      %1109 = vst [vmem:[%s443] sm:$0xff] %v1105
      %1110 = vst [vmem:[%s443 + $0x8] sm:$0xff] %v1106
      %1111 = vst [vmem:[%s443 + $0x10] sm:$0xf] %v1107
      %1112 = vst [vmem:[%s443 + $0x18] sm:$0xf] %v1108
      %p1113 = scmp.lt.s32.totalorder %s22, 1
      %s1114 = scalar_select %p1113, %s22, 1
      %s1115 = smul.addr %s1114, 4
      %s1116 = smul.addr %s1115, 8
      %s1117 = scalar_lea.vmem %s11, %s1116
      // Predicated region
      $region65: #{level_step.3} parent=63 // pred_check
        %p1118 = pneg %p291
      $region66: #{level_step.3} parent=63 // pred_check_branch
        %1120 = sbr.rel (%p1118) target = $region68
      $region67: #{level_step.3} parent=63 // pred_region
        _
      $region68: #{level_step.3} parent=63 // pred_fallthru
        _
    $region64: #{level_step.3} parent=5 // pred_fallthru
      _
    %p1121 = scmp.le.s32.totalorder 2, %s17
    // Predicated region
    $region69: #{level_step.3} parent=5 // pred_check
      %p1122 = pneg %p1121
    $region70: #{level_step.3} parent=5 // pred_check_branch
      %1124 = sbr.rel (%p1122) target = $region72
    $region71: #{level_step.3} parent=5 // pred_region
      %s1125 = ssub.s32 %s17, 2
      // Predicated region
      $region73: #{level_step.3} parent=71 // pred_check
        %p1126 = pneg %p297
      $region74: #{level_step.3} parent=71 // pred_check_branch
        %1128 = sbr.rel (%p1126) target = $region76
      $region75: #{level_step.3} parent=71 // pred_region
        %p1129 = scmp.lt.s32.totalorder %s23, 1
        %s1130 = scalar_select %p1129, %s23, 1
        %s1131 = smul.addr %s1130, 4
        %s1132 = smul.addr %s1131, 8
        %s1133 = scalar_lea.vmem %s11, %s1132
      $region76: #{level_step.3} parent=71 // pred_fallthru
        _
    $region72: #{level_step.3} parent=5 // pred_fallthru
      _
  $region6: #{level_step.3} parent=0 // loop_footer
    %s21 = sadd.s32 1, %s17
  $region7: #{level_step.3} parent=0 // loop_footer_branch
    %16 = sbr.rel target = $region3
  $region8: #{level_step.3} parent=0 // loop_exit
    _

</llo_original>
